<compile_context>
chip_gen: v7x
topology: tpu7x:2x2x1
jax: 0.10.0
libtpu: 0.0.40
codegen_flags: <defaults>
</compile_context>

<pallas_src>
import numpy as np
import jax
import jax.numpy as jnp
from jax.experimental import pallas as pl
from jax.experimental.pallas import tpu as pltpu

# ---- model hyper-parameters (OnsagerNet(n_nodes=[nVar, H, H], forcing=True,
#      ResNet=True, pot_beta=0.1, ons_min_d=0.1, f_linear=True, fid=0)) ----
NVAR = 8            # n_nodes[0]
HID = 32            # n_nodes[1] == n_nodes[2]
BATCH = 256         # total batch in the demo (2 lane-dense tiles)
BATCH_TILE = 128    # lane-dense batch tile
POT_BETA = 0.1
ONS_MIN_D = 0.1


def f_act(x):
    # fid == 0: relu(x)^2 - relu(x - 0.5)^2
    r = jnp.maximum(x, 0.0)
    r2 = jnp.maximum(x - 0.5, 0.0)
    return r * r - r2 * r2


def f_act_grad(x):
    # derivative of f_act (fid == 0)
    return 2.0 * jnp.maximum(x, 0.0) - 2.0 * jnp.maximum(x - 0.5, 0.0)


def onsager_kernel(
    x_ref,              # (NVAR, BT)          feature-major state tile
    wx_ref, bx_ref,     # (HID+2*NVAR, NVAR), (HID+2*NVAR, 1)   [W0; Wpl; Wlf]
    w1_ref, b1_ref,     # (HID, HID), (HID, 1)                  W1 (fwd)
    wh_ref, bh_ref,     # (NVAR+NVAR^2, HID), (NVAR+NVAR^2, 1)  [Wpot; Wmat]
    wv_ref,             # (HID+NVAR, NVAR)                      [Wpot^T; Wpl^T]
    w1b_ref,            # (HID, HID)                            W1^T (bwd)
    w0b_ref,            # (NVAR, HID)                           W0^T (bwd)
    exp_ref,            # (2*NVAR^2, NVAR)   [R; T]  row/col expansion
    mred_ref,           # (2*NVAR, NVAR^2)   [TL^T; TU^T] masked reductions
    tile_ref,           # (NVAR^2, NVAR)     T  col expansion
    rl_ref, ru_ref,     # (NVAR, NVAR^2)     RL^T, RU^T masked reductions
    out_ref,            # (NVAR, BT)
):
    n = NVAR
    nn = n * n
    X = x_ref[...]                                           # (n, BT)

    # ------- fused input-side matmul: pre0 | PotLinear | lforce -------
    fx = jnp.dot(wx_ref[...], X, preferred_element_type=jnp.float32) + bx_ref[...]
    pre0 = fx[:HID]                                          # (HID, BT)
    pot_lin = fx[HID:HID + n]                                # (n, BT)   (incl. bias)
    lforce = fx[HID + n:]                                    # (n, BT)   (incl. bias)

    # ------- base (ResNet) hidden network -------
    h0 = f_act(pre0)
    pre1 = jnp.dot(w1_ref[...], h0, preferred_element_type=jnp.float32) + b1_ref[...]
    h1 = f_act(pre1) + h0                                    # ResNet = 1.0

    # ------- fused h1-side matmul: PotLayer | MatLayer -------
    fh = jnp.dot(wh_ref[...], h1, preferred_element_type=jnp.float32) + bh_ref[...]
    pot = fh[:n] + pot_lin                                   # (n, BT)
    matA = fh[n:]                                            # (nn, BT)  row r = i*n+j

    # ------- analytic gradient of V = sum(pot^2) + pot_beta*sum(x^2) -------
    v = 2.0 * pot                                            # dV/dPot
    fv = jnp.dot(wv_ref[...], v, preferred_element_type=jnp.float32)   # (HID+n, BT)
    grad_h1 = fv[:HID]
    gx_pl = fv[HID:]                                         # Wpl^T @ v
    grad_pre1 = grad_h1 * f_act_grad(pre1)
    grad_h0 = jnp.dot(w1b_ref[...], grad_pre1,
                      preferred_element_type=jnp.float32) + grad_h1
    grad_pre0 = grad_h0 * f_act_grad(pre0)
    grad_x = (jnp.dot(w0b_ref[...], grad_pre0, preferred_element_type=jnp.float32)
              + gx_pl + (2.0 * POT_BETA) * X)
    g = -grad_x                                              # (n, BT)

    # ------- makePDM + MW @ g, on the flat (nn, BT) matA -------
    # MW = AL@AL^T + AU - AU^T   (AL = tril incl diag, AU = strict triu)
    eg = jnp.dot(exp_ref[...], g, preferred_element_type=jnp.float32)  # (2nn, BT)
    g_row = eg[:nn]                                          # row r=i*n+j -> g[i]
    g_col = eg[nn:]                                          # row r=i*n+j -> g[j]
    p_row = matA * g_row
    tr = jnp.dot(mred_ref[...], p_row, preferred_element_type=jnp.float32)  # (2n, BT)
    t = tr[:n]                                               # AL^T @ g
    aug = tr[n:]                                             # AU^T @ g
    c_t = jnp.dot(tile_ref[...], t, preferred_element_type=jnp.float32)     # row r -> t[j]
    res_l = jnp.dot(rl_ref[...], matA * c_t, preferred_element_type=jnp.float32)  # AL@(AL^T g)
    res_u = jnp.dot(ru_ref[...], matA * g_col, preferred_element_type=jnp.float32)  # AU@g
    mv = res_l + res_u - aug                                 # MW @ g

    out_ref[...] = mv + ONS_MIN_D * g + lforce


def _make_pdm_constants():
    """Constant 0/1 expansion / masked-reduction matrices for flat makePDM."""
    n = NVAR
    i_idx = np.arange(n * n) // n
    j_idx = np.arange(n * n) % n
    R = (i_idx[:, None] == np.arange(n)[None, :]).astype(np.float32)   # (nn, n): r->i
    T = (j_idx[:, None] == np.arange(n)[None, :]).astype(np.float32)   # (nn, n): r->j
    lower = (j_idx <= i_idx).astype(np.float32)                        # incl. diagonal
    upper = (j_idx > i_idx).astype(np.float32)                         # strict upper
    TL_T = T.T * lower[None, :]     # (n, nn): sum_i AL[i, k]
    TU_T = T.T * upper[None, :]     # (n, nn): sum_i AU[i, k]
    RL_T = R.T * lower[None, :]     # (n, nn): sum_j AL[k, j]
    RU_T = R.T * upper[None, :]     # (n, nn): sum_j AU[k, j]
    EXP = np.concatenate([R, T], axis=0)        # (2nn, n)
    MRED = np.concatenate([TL_T, TU_T], axis=0)  # (2n, nn)
    return (jnp.asarray(EXP), jnp.asarray(MRED), jnp.asarray(T),
            jnp.asarray(RL_T), jnp.asarray(RU_T))


def prepare_params(params):
    """One-time layout conversion: fused, feature-major weights + constants."""
    (w0, b0, w1, b1, wpot, bpot, wpl, bpl, wmat, bmat, wlf, blf) = params
    # weights stored (in, out) -> feature-major needs (out, in) = .T
    wx = jnp.concatenate([w0.T, wpl.T, wlf.T], axis=0)        # (HID+2n, n)
    bx = jnp.concatenate([b0, bpl, blf], axis=1).T            # (HID+2n, 1)
    w1_fm = w1.T                                              # (HID, HID)
    b1_fm = b1.T                                              # (HID, 1)
    wh = jnp.concatenate([wpot.T, wmat.T], axis=0)            # (n+nn, HID)
    bh = jnp.concatenate([bpot, bmat], axis=1).T              # (n+nn, 1)
    wv = jnp.concatenate([wpot, wpl], axis=0)                 # (HID+n, n)  (bwd)
    w1b = w1                                                  # (HID, HID)  (bwd)
    w0b = w0                                                  # (n, HID)    (bwd)
    exp_c, mred_c, tile_c, rl_c, ru_c = _make_pdm_constants()
    return (wx, bx, w1_fm, b1_fm, wh, bh, wv, w1b, w0b,
            exp_c, mred_c, tile_c, rl_c, ru_c)


def _pallas_forward_fm(x_fm, prep):
    """x_fm: (NVAR, B) feature-major, B a multiple of BATCH_TILE."""
    _, B = x_fm.shape
    grid = (B // BATCH_TILE,)
    x_spec = pl.BlockSpec((NVAR, BATCH_TILE), lambda b: (0, b))
    const_specs = [pl.BlockSpec(p.shape, lambda b: (0, 0)) for p in prep]
    out_spec = pl.BlockSpec((NVAR, BATCH_TILE), lambda b: (0, b))
    return pl.pallas_call(
        onsager_kernel,
        out_shape=jax.ShapeDtypeStruct((NVAR, B), jnp.float32),
        grid_spec=pltpu.PrefetchScalarGridSpec(
            num_scalar_prefetch=0,
            grid=grid,
            in_specs=[x_spec] + const_specs,
            out_specs=out_spec,
        ),
        compiler_params=pltpu.CompilerParams(
            dimension_semantics=("parallel",)),   # shard batch tiles over TCs (v7x)
    )(x_fm, *prep)


@jax.jit
def onsager_forward(x, prep):
    """x: (B, NVAR) batch-major (module interface); returns (B, NVAR)."""
    B = x.shape[0]
    pad = (-B) % BATCH_TILE
    x_fm = x.T                                                # (NVAR, B)
    if pad:
        x_fm = jnp.pad(x_fm, ((0, 0), (0, pad)))
    out_fm = _pallas_forward_fm(x_fm, prep)
    return out_fm[:, :B].T
# TODO(synk): for ODE integration (ode_rk2/rk3) fuse the time-step loop into the
# kernel with an "arbitrary" grid axis carrying x in VMEM scratch to amortize
# launch/DMA overhead further.


def reference_forward(x, params):
    """Pure-JAX reference using jax.grad for the potential gradient."""
    (w0, b0, w1, b1, wpot, bpot, wpl, bpl, wmat, bmat, wlf, blf) = params

    def hidden(xb):
        h0 = f_act(xb @ w0 + b0[0])
        h1 = f_act(h0 @ w1 + b1[0]) + h0
        return h1

    def V(xb):
        h = hidden(xb)
        pot = h @ wpot + bpot[0] + xb @ wpl + bpl[0]
        return jnp.sum(pot ** 2) + POT_BETA * jnp.sum(xb ** 2)

    g = -jax.grad(V)(x)
    h = hidden(x)
    matA = (h @ wmat + bmat[0]).reshape(-1, NVAR, NVAR)
    AL = jnp.tril(matA)
    AU = jnp.triu(matA, 1)
    Aant = AU - jnp.swapaxes(AU, 1, 2)
    Asym = jnp.einsum('bik,bjk->bij', AL, AL)
    MW = Aant + Asym
    lf = x @ wlf + blf[0]
    return jnp.einsum('bij,bj->bi', MW, g) + ONS_MIN_D * g + lf


def init_params(key):
    ks = jax.random.split(key, 12)
    scale = 0.1

    def w(k, shape):
        return (scale * jax.random.normal(k, shape)).astype(jnp.float32)

    w0 = w(ks[0], (NVAR, HID));   b0 = w(ks[1], (1, HID)) * 0.05
    w1 = w(ks[2], (HID, HID));    b1 = w(ks[3], (1, HID)) * 0.05
    wpot = w(ks[4], (HID, NVAR)); bpot = w(ks[5], (1, NVAR)) * 0.05
    wpl = w(ks[6], (NVAR, NVAR)); bpl = w(ks[7], (1, NVAR)) * 0.05
    wmat = w(ks[8], (HID, NVAR * NVAR))
    # MatLayer bias is initialized to an orthogonal nVar x nVar matrix in torch;
    # use the identity (orthogonal) flattened, deterministically.
    bmat = jnp.eye(NVAR, dtype=jnp.float32).reshape(1, NVAR * NVAR)
    wlf = w(ks[9], (NVAR, NVAR)); blf = w(ks[10], (1, NVAR)) * 0.05
    return (w0, b0, w1, b1, wpot, bpot, wpl, bpl, wmat, bmat, wlf, blf)


if __name__ == "__main__":
    key = jax.random.PRNGKey(0)
    kx, kp = jax.random.split(key)
    x = jax.random.normal(kx, (BATCH, NVAR), dtype=jnp.float32)
    params = init_params(kp)
    prep = prepare_params(params)   # one-time layout conversion (no per-call .T)

    out = onsager_forward(x, prep)
    out = jax.block_until_ready(out)

    ref = reference_forward(x, params)
    assert out.shape == (BATCH, NVAR)
    err = jnp.max(jnp.abs(out - ref))
    assert jnp.allclose(out, ref, atol=1e-4, rtol=1e-4), f"max abs err = {err}"

    print("KERNEL_OK")
</pallas_src>

<mosaic_0001>
module attributes {stable_mosaic.version = 11 : i64} {
  func.func @onsager_kernel(%arg0: i32, %arg1: memref<8x128xf32, #tpu.memory_space<vmem>>, %arg2: memref<48x8xf32, #tpu.memory_space<vmem>>, %arg3: memref<48x1xf32, #tpu.memory_space<vmem>>, %arg4: memref<32x32xf32, #tpu.memory_space<vmem>>, %arg5: memref<32x1xf32, #tpu.memory_space<vmem>>, %arg6: memref<72x32xf32, #tpu.memory_space<vmem>>, %arg7: memref<72x1xf32, #tpu.memory_space<vmem>>, %arg8: memref<40x8xf32, #tpu.memory_space<vmem>>, %arg9: memref<32x32xf32, #tpu.memory_space<vmem>>, %arg10: memref<8x32xf32, #tpu.memory_space<vmem>>, %arg11: memref<128x8xf32, #tpu.memory_space<vmem>>, %arg12: memref<16x64xf32, #tpu.memory_space<vmem>>, %arg13: memref<64x8xf32, #tpu.memory_space<vmem>>, %arg14: memref<8x64xf32, #tpu.memory_space<vmem>>, %arg15: memref<8x64xf32, #tpu.memory_space<vmem>>, %arg16: memref<8x128xf32, #tpu.memory_space<vmem>>) attributes {dimension_semantics = [#tpu.dimension_semantics<parallel>], iteration_bounds = array<i64: 2>, scalar_prefetch = 0 : i64, scratch_operands = 0 : i64, tpu.core_type = #tpu.core_type<tc>, window_params = [{transform_indices = @transform_0, window_bounds = array<i64: 8, 128>}, {pipeline_mode = #tpu.pipeline_mode<synchronous>, transform_indices = @transform_1, window_bounds = array<i64: 48, 8>}, {pipeline_mode = #tpu.pipeline_mode<synchronous>, transform_indices = @transform_2, window_bounds = array<i64: 48, 1>}, {pipeline_mode = #tpu.pipeline_mode<synchronous>, transform_indices = @transform_3, window_bounds = array<i64: 32, 32>}, {pipeline_mode = #tpu.pipeline_mode<synchronous>, transform_indices = @transform_4, window_bounds = array<i64: 32, 1>}, {pipeline_mode = #tpu.pipeline_mode<synchronous>, transform_indices = @transform_5, window_bounds = array<i64: 72, 32>}, {pipeline_mode = #tpu.pipeline_mode<synchronous>, transform_indices = @transform_6, window_bounds = array<i64: 72, 1>}, {pipeline_mode = #tpu.pipeline_mode<synchronous>, transform_indices = @transform_7, window_bounds = array<i64: 40, 8>}, {pipeline_mode = #tpu.pipeline_mode<synchronous>, transform_indices = @transform_8, window_bounds = array<i64: 32, 32>}, {pipeline_mode = #tpu.pipeline_mode<synchronous>, transform_indices = @transform_9, window_bounds = array<i64: 8, 32>}, {pipeline_mode = #tpu.pipeline_mode<synchronous>, transform_indices = @transform_10, window_bounds = array<i64: 128, 8>}, {pipeline_mode = #tpu.pipeline_mode<synchronous>, transform_indices = @transform_11, window_bounds = array<i64: 16, 64>}, {pipeline_mode = #tpu.pipeline_mode<synchronous>, transform_indices = @transform_12, window_bounds = array<i64: 64, 8>}, {pipeline_mode = #tpu.pipeline_mode<synchronous>, transform_indices = @transform_13, window_bounds = array<i64: 8, 64>}, {pipeline_mode = #tpu.pipeline_mode<synchronous>, transform_indices = @transform_14, window_bounds = array<i64: 8, 64>}, {transform_indices = @transform_15, window_bounds = array<i64: 8, 128>}]} {
    %c0 = arith.constant 0 : index
    %c0_0 = arith.constant 0 : index
    %0 = vector.load %arg1[%c0, %c0_0] : memref<8x128xf32, #tpu.memory_space<vmem>>, vector<8x128xf32>
    %c0_1 = arith.constant 0 : index
    %c0_2 = arith.constant 0 : index
    %1 = vector.load %arg2[%c0_1, %c0_2] : memref<48x8xf32, #tpu.memory_space<vmem>>, vector<48x8xf32>
    %cst = arith.constant dense<0.000000e+00> : vector<48x128xf32>
    %2 = tpu.matmul %1, %0, %cst {dimension_numbers = #tpu.dot_dimension_numbers<[1], [0], [0], [1], [0, 0, 1, 1], [], []>} : vector<48x8xf32>, vector<8x128xf32>, vector<48x128xf32> -> vector<48x128xf32>
    %c0_3 = arith.constant 0 : index
    %c0_4 = arith.constant 0 : index
    %3 = vector.load %arg3[%c0_3, %c0_4] : memref<48x1xf32, #tpu.memory_space<vmem>>, vector<48x1xf32>
    %4 = vector.broadcast %3 : vector<48x1xf32> to vector<48x128xf32>
    %5 = arith.addf %2, %4 : vector<48x128xf32>
    %6 = vector.extract_strided_slice %5 {offsets = [0, 0], sizes = [32, 128], strides = [1, 1]} : vector<48x128xf32> to vector<32x128xf32>
    %7 = vector.extract_strided_slice %5 {offsets = [32, 0], sizes = [8, 128], strides = [1, 1]} : vector<48x128xf32> to vector<8x128xf32>
    %8 = vector.extract_strided_slice %5 {offsets = [40, 0], sizes = [8, 128], strides = [1, 1]} : vector<48x128xf32> to vector<8x128xf32>
    %cst_5 = arith.constant 0.000000e+00 : f32
    %9 = vector.broadcast %cst_5 : f32 to vector<32x128xf32>
    %10 = arith.maximumf %6, %9 : vector<32x128xf32>
    %cst_6 = arith.constant 5.000000e-01 : f32
    %11 = vector.broadcast %cst_6 : f32 to vector<32x128xf32>
    %12 = arith.subf %6, %11 : vector<32x128xf32>
    %cst_7 = arith.constant 0.000000e+00 : f32
    %13 = vector.broadcast %cst_7 : f32 to vector<32x128xf32>
    %14 = arith.maximumf %12, %13 : vector<32x128xf32>
    %15 = arith.mulf %10, %10 : vector<32x128xf32>
    %16 = arith.mulf %14, %14 : vector<32x128xf32>
    %17 = arith.subf %15, %16 : vector<32x128xf32>
    %c0_8 = arith.constant 0 : index
    %c0_9 = arith.constant 0 : index
    %18 = vector.load %arg4[%c0_8, %c0_9] : memref<32x32xf32, #tpu.memory_space<vmem>>, vector<32x32xf32>
    %cst_10 = arith.constant dense<0.000000e+00> : vector<32x128xf32>
    %19 = tpu.matmul %18, %17, %cst_10 {dimension_numbers = #tpu.dot_dimension_numbers<[1], [0], [0], [1], [0, 0, 1, 1], [], []>} : vector<32x32xf32>, vector<32x128xf32>, vector<32x128xf32> -> vector<32x128xf32>
    %c0_11 = arith.constant 0 : index
    %c0_12 = arith.constant 0 : index
    %20 = vector.load %arg5[%c0_11, %c0_12] : memref<32x1xf32, #tpu.memory_space<vmem>>, vector<32x1xf32>
    %21 = vector.broadcast %20 : vector<32x1xf32> to vector<32x128xf32>
    %22 = arith.addf %19, %21 : vector<32x128xf32>
    %cst_13 = arith.constant 0.000000e+00 : f32
    %23 = vector.broadcast %cst_13 : f32 to vector<32x128xf32>
    %24 = arith.maximumf %22, %23 : vector<32x128xf32>
    %cst_14 = arith.constant 5.000000e-01 : f32
    %25 = vector.broadcast %cst_14 : f32 to vector<32x128xf32>
    %26 = arith.subf %22, %25 : vector<32x128xf32>
    %cst_15 = arith.constant 0.000000e+00 : f32
    %27 = vector.broadcast %cst_15 : f32 to vector<32x128xf32>
    %28 = arith.maximumf %26, %27 : vector<32x128xf32>
    %29 = arith.mulf %24, %24 : vector<32x128xf32>
    %30 = arith.mulf %28, %28 : vector<32x128xf32>
    %31 = arith.subf %29, %30 : vector<32x128xf32>
    %32 = arith.addf %31, %17 : vector<32x128xf32>
    %c0_16 = arith.constant 0 : index
    %c0_17 = arith.constant 0 : index
    %33 = vector.load %arg6[%c0_16, %c0_17] : memref<72x32xf32, #tpu.memory_space<vmem>>, vector<72x32xf32>
    %cst_18 = arith.constant dense<0.000000e+00> : vector<72x128xf32>
    %34 = tpu.matmul %33, %32, %cst_18 {dimension_numbers = #tpu.dot_dimension_numbers<[1], [0], [0], [1], [0, 0, 1, 1], [], []>} : vector<72x32xf32>, vector<32x128xf32>, vector<72x128xf32> -> vector<72x128xf32>
    %c0_19 = arith.constant 0 : index
    %c0_20 = arith.constant 0 : index
    %35 = vector.load %arg7[%c0_19, %c0_20] : memref<72x1xf32, #tpu.memory_space<vmem>>, vector<72x1xf32>
    %36 = vector.broadcast %35 : vector<72x1xf32> to vector<72x128xf32>
    %37 = arith.addf %34, %36 : vector<72x128xf32>
    %38 = vector.extract_strided_slice %37 {offsets = [0, 0], sizes = [8, 128], strides = [1, 1]} : vector<72x128xf32> to vector<8x128xf32>
    %39 = arith.addf %38, %7 : vector<8x128xf32>
    %40 = vector.extract_strided_slice %37 {offsets = [8, 0], sizes = [64, 128], strides = [1, 1]} : vector<72x128xf32> to vector<64x128xf32>
    %cst_21 = arith.constant 2.000000e+00 : f32
    %41 = vector.broadcast %cst_21 : f32 to vector<8x128xf32>
    %42 = arith.mulf %41, %39 : vector<8x128xf32>
    %c0_22 = arith.constant 0 : index
    %c0_23 = arith.constant 0 : index
    %43 = vector.load %arg8[%c0_22, %c0_23] : memref<40x8xf32, #tpu.memory_space<vmem>>, vector<40x8xf32>
    %cst_24 = arith.constant dense<0.000000e+00> : vector<40x128xf32>
    %44 = tpu.matmul %43, %42, %cst_24 {dimension_numbers = #tpu.dot_dimension_numbers<[1], [0], [0], [1], [0, 0, 1, 1], [], []>} : vector<40x8xf32>, vector<8x128xf32>, vector<40x128xf32> -> vector<40x128xf32>
    %45 = vector.extract_strided_slice %44 {offsets = [0, 0], sizes = [32, 128], strides = [1, 1]} : vector<40x128xf32> to vector<32x128xf32>
    %46 = vector.extract_strided_slice %44 {offsets = [32, 0], sizes = [8, 128], strides = [1, 1]} : vector<40x128xf32> to vector<8x128xf32>
    %cst_25 = arith.constant 0.000000e+00 : f32
    %47 = vector.broadcast %cst_25 : f32 to vector<32x128xf32>
    %48 = arith.maximumf %22, %47 : vector<32x128xf32>
    %cst_26 = arith.constant 2.000000e+00 : f32
    %49 = vector.broadcast %cst_26 : f32 to vector<32x128xf32>
    %50 = arith.mulf %49, %48 : vector<32x128xf32>
    %cst_27 = arith.constant 5.000000e-01 : f32
    %51 = vector.broadcast %cst_27 : f32 to vector<32x128xf32>
    %52 = arith.subf %22, %51 : vector<32x128xf32>
    %cst_28 = arith.constant 0.000000e+00 : f32
    %53 = vector.broadcast %cst_28 : f32 to vector<32x128xf32>
    %54 = arith.maximumf %52, %53 : vector<32x128xf32>
    %cst_29 = arith.constant 2.000000e+00 : f32
    %55 = vector.broadcast %cst_29 : f32 to vector<32x128xf32>
    %56 = arith.mulf %55, %54 : vector<32x128xf32>
    %57 = arith.subf %50, %56 : vector<32x128xf32>
    %58 = arith.mulf %45, %57 : vector<32x128xf32>
    %c0_30 = arith.constant 0 : index
    %c0_31 = arith.constant 0 : index
    %59 = vector.load %arg9[%c0_30, %c0_31] : memref<32x32xf32, #tpu.memory_space<vmem>>, vector<32x32xf32>
    %cst_32 = arith.constant dense<0.000000e+00> : vector<32x128xf32>
    %60 = tpu.matmul %59, %58, %cst_32 {dimension_numbers = #tpu.dot_dimension_numbers<[1], [0], [0], [1], [0, 0, 1, 1], [], []>} : vector<32x32xf32>, vector<32x128xf32>, vector<32x128xf32> -> vector<32x128xf32>
    %61 = arith.addf %60, %45 : vector<32x128xf32>
    %cst_33 = arith.constant 0.000000e+00 : f32
    %62 = vector.broadcast %cst_33 : f32 to vector<32x128xf32>
    %63 = arith.maximumf %6, %62 : vector<32x128xf32>
    %cst_34 = arith.constant 2.000000e+00 : f32
    %64 = vector.broadcast %cst_34 : f32 to vector<32x128xf32>
    %65 = arith.mulf %64, %63 : vector<32x128xf32>
    %cst_35 = arith.constant 5.000000e-01 : f32
    %66 = vector.broadcast %cst_35 : f32 to vector<32x128xf32>
    %67 = arith.subf %6, %66 : vector<32x128xf32>
    %cst_36 = arith.constant 0.000000e+00 : f32
    %68 = vector.broadcast %cst_36 : f32 to vector<32x128xf32>
    %69 = arith.maximumf %67, %68 : vector<32x128xf32>
    %cst_37 = arith.constant 2.000000e+00 : f32
    %70 = vector.broadcast %cst_37 : f32 to vector<32x128xf32>
    %71 = arith.mulf %70, %69 : vector<32x128xf32>
    %72 = arith.subf %65, %71 : vector<32x128xf32>
    %73 = arith.mulf %61, %72 : vector<32x128xf32>
    %c0_38 = arith.constant 0 : index
    %c0_39 = arith.constant 0 : index
    %74 = vector.load %arg10[%c0_38, %c0_39] : memref<8x32xf32, #tpu.memory_space<vmem>>, vector<8x32xf32>
    %cst_40 = arith.constant dense<0.000000e+00> : vector<8x128xf32>
    %75 = tpu.matmul %74, %73, %cst_40 {dimension_numbers = #tpu.dot_dimension_numbers<[1], [0], [0], [1], [0, 0, 1, 1], [], []>} : vector<8x32xf32>, vector<32x128xf32>, vector<8x128xf32> -> vector<8x128xf32>
    %76 = arith.addf %75, %46 : vector<8x128xf32>
    %cst_41 = arith.constant 2.000000e-01 : f32
    %77 = vector.broadcast %cst_41 : f32 to vector<8x128xf32>
    %78 = arith.mulf %77, %0 : vector<8x128xf32>
    %79 = arith.addf %76, %78 : vector<8x128xf32>
    %cst_42 = arith.constant 0.000000e+00 : f32
    %80 = vector.broadcast %cst_42 : f32 to vector<8x128xf32>
    %81 = arith.subf %80, %79 : vector<8x128xf32>
    %c0_43 = arith.constant 0 : index
    %c0_44 = arith.constant 0 : index
    %82 = vector.load %arg11[%c0_43, %c0_44] : memref<128x8xf32, #tpu.memory_space<vmem>>, vector<128x8xf32>
    %cst_45 = arith.constant dense<0.000000e+00> : vector<128x128xf32>
    %83 = tpu.matmul %82, %81, %cst_45 {dimension_numbers = #tpu.dot_dimension_numbers<[1], [0], [0], [1], [0, 0, 1, 1], [], []>} : vector<128x8xf32>, vector<8x128xf32>, vector<128x128xf32> -> vector<128x128xf32>
    %84 = vector.extract_strided_slice %83 {offsets = [0, 0], sizes = [64, 128], strides = [1, 1]} : vector<128x128xf32> to vector<64x128xf32>
    %85 = vector.extract_strided_slice %83 {offsets = [64, 0], sizes = [64, 128], strides = [1, 1]} : vector<128x128xf32> to vector<64x128xf32>
    %86 = arith.mulf %40, %84 : vector<64x128xf32>
    %c0_46 = arith.constant 0 : index
    %c0_47 = arith.constant 0 : index
    %87 = vector.load %arg12[%c0_46, %c0_47] : memref<16x64xf32, #tpu.memory_space<vmem>>, vector<16x64xf32>
    %cst_48 = arith.constant dense<0.000000e+00> : vector<16x128xf32>
    %88 = tpu.matmul %87, %86, %cst_48 {dimension_numbers = #tpu.dot_dimension_numbers<[1], [0], [0], [1], [0, 0, 1, 1], [], []>} : vector<16x64xf32>, vector<64x128xf32>, vector<16x128xf32> -> vector<16x128xf32>
    %89 = vector.extract_strided_slice %88 {offsets = [0, 0], sizes = [8, 128], strides = [1, 1]} : vector<16x128xf32> to vector<8x128xf32>
    %90 = vector.extract_strided_slice %88 {offsets = [8, 0], sizes = [8, 128], strides = [1, 1]} : vector<16x128xf32> to vector<8x128xf32>
    %c0_49 = arith.constant 0 : index
    %c0_50 = arith.constant 0 : index
    %91 = vector.load %arg13[%c0_49, %c0_50] : memref<64x8xf32, #tpu.memory_space<vmem>>, vector<64x8xf32>
    %cst_51 = arith.constant dense<0.000000e+00> : vector<64x128xf32>
    %92 = tpu.matmul %91, %89, %cst_51 {dimension_numbers = #tpu.dot_dimension_numbers<[1], [0], [0], [1], [0, 0, 1, 1], [], []>} : vector<64x8xf32>, vector<8x128xf32>, vector<64x128xf32> -> vector<64x128xf32>
    %c0_52 = arith.constant 0 : index
    %c0_53 = arith.constant 0 : index
    %93 = vector.load %arg14[%c0_52, %c0_53] : memref<8x64xf32, #tpu.memory_space<vmem>>, vector<8x64xf32>
    %94 = arith.mulf %40, %92 : vector<64x128xf32>
    %cst_54 = arith.constant dense<0.000000e+00> : vector<8x128xf32>
    %95 = tpu.matmul %93, %94, %cst_54 {dimension_numbers = #tpu.dot_dimension_numbers<[1], [0], [0], [1], [0, 0, 1, 1], [], []>} : vector<8x64xf32>, vector<64x128xf32>, vector<8x128xf32> -> vector<8x128xf32>
    %c0_55 = arith.constant 0 : index
    %c0_56 = arith.constant 0 : index
    %96 = vector.load %arg15[%c0_55, %c0_56] : memref<8x64xf32, #tpu.memory_space<vmem>>, vector<8x64xf32>
    %97 = arith.mulf %40, %85 : vector<64x128xf32>
    %cst_57 = arith.constant dense<0.000000e+00> : vector<8x128xf32>
    %98 = tpu.matmul %96, %97, %cst_57 {dimension_numbers = #tpu.dot_dimension_numbers<[1], [0], [0], [1], [0, 0, 1, 1], [], []>} : vector<8x64xf32>, vector<64x128xf32>, vector<8x128xf32> -> vector<8x128xf32>
    %99 = arith.addf %95, %98 : vector<8x128xf32>
    %100 = arith.subf %99, %90 : vector<8x128xf32>
    %cst_58 = arith.constant 1.000000e-01 : f32
    %101 = vector.broadcast %cst_58 : f32 to vector<8x128xf32>
    %102 = arith.mulf %101, %81 : vector<8x128xf32>
    %103 = arith.addf %100, %102 : vector<8x128xf32>
    %104 = arith.addf %103, %8 : vector<8x128xf32>
    %c0_59 = arith.constant 0 : index
    %c0_60 = arith.constant 0 : index
    %105 = vector.load %arg16[%c0_59, %c0_60] : memref<8x128xf32, #tpu.memory_space<vmem>>, vector<8x128xf32>
    tpu.vector_store %arg16[%c0_59, %c0_60], %104 {strides = array<i32>} : memref<8x128xf32, #tpu.memory_space<vmem>>, vector<8x128xf32>,
    return
  }
  func.func @transform_0(%arg0: i32) -> (i32, i32) {
    %c0_i32 = arith.constant 0 : i32
    %c0_i32_0 = arith.constant 0 : i32
    return %c0_i32, %arg0 : i32, i32
  }
  func.func @transform_1(%arg0: i32) -> (i32, i32) {
    %c0_i32 = arith.constant 0 : i32
    %c0_i32_0 = arith.constant 0 : i32
    %c0_i32_1 = arith.constant 0 : i32
    return %c0_i32, %c0_i32_0 : i32, i32
  }
  func.func @transform_2(%arg0: i32) -> (i32, i32) {
    %c0_i32 = arith.constant 0 : i32
    %c0_i32_0 = arith.constant 0 : i32
    %c0_i32_1 = arith.constant 0 : i32
    return %c0_i32, %c0_i32_0 : i32, i32
  }
  func.func @transform_3(%arg0: i32) -> (i32, i32) {
    %c0_i32 = arith.constant 0 : i32
    %c0_i32_0 = arith.constant 0 : i32
    %c0_i32_1 = arith.constant 0 : i32
    return %c0_i32, %c0_i32_0 : i32, i32
  }
  func.func @transform_4(%arg0: i32) -> (i32, i32) {
    %c0_i32 = arith.constant 0 : i32
    %c0_i32_0 = arith.constant 0 : i32
    %c0_i32_1 = arith.constant 0 : i32
    return %c0_i32, %c0_i32_0 : i32, i32
  }
  func.func @transform_5(%arg0: i32) -> (i32, i32) {
    %c0_i32 = arith.constant 0 : i32
    %c0_i32_0 = arith.constant 0 : i32
    %c0_i32_1 = arith.constant 0 : i32
    return %c0_i32, %c0_i32_0 : i32, i32
  }
  func.func @transform_6(%arg0: i32) -> (i32, i32) {
    %c0_i32 = arith.constant 0 : i32
    %c0_i32_0 = arith.constant 0 : i32
    %c0_i32_1 = arith.constant 0 : i32
    return %c0_i32, %c0_i32_0 : i32, i32
  }
  func.func @transform_7(%arg0: i32) -> (i32, i32) {
    %c0_i32 = arith.constant 0 : i32
    %c0_i32_0 = arith.constant 0 : i32
    %c0_i32_1 = arith.constant 0 : i32
    return %c0_i32, %c0_i32_0 : i32, i32
  }
  func.func @transform_8(%arg0: i32) -> (i32, i32) {
    %c0_i32 = arith.constant 0 : i32
    %c0_i32_0 = arith.constant 0 : i32
    %c0_i32_1 = arith.constant 0 : i32
    return %c0_i32, %c0_i32_0 : i32, i32
  }
  func.func @transform_9(%arg0: i32) -> (i32, i32) {
    %c0_i32 = arith.constant 0 : i32
    %c0_i32_0 = arith.constant 0 : i32
    %c0_i32_1 = arith.constant 0 : i32
    return %c0_i32, %c0_i32_0 : i32, i32
  }
  func.func @transform_10(%arg0: i32) -> (i32, i32) {
    %c0_i32 = arith.constant 0 : i32
    %c0_i32_0 = arith.constant 0 : i32
    %c0_i32_1 = arith.constant 0 : i32
    return %c0_i32, %c0_i32_0 : i32, i32
  }
  func.func @transform_11(%arg0: i32) -> (i32, i32) {
    %c0_i32 = arith.constant 0 : i32
    %c0_i32_0 = arith.constant 0 : i32
    %c0_i32_1 = arith.constant 0 : i32
    return %c0_i32, %c0_i32_0 : i32, i32
  }
  func.func @transform_12(%arg0: i32) -> (i32, i32) {
    %c0_i32 = arith.constant 0 : i32
    %c0_i32_0 = arith.constant 0 : i32
    %c0_i32_1 = arith.constant 0 : i32
    return %c0_i32, %c0_i32_0 : i32, i32
  }
  func.func @transform_13(%arg0: i32) -> (i32, i32) {
    %c0_i32 = arith.constant 0 : i32
    %c0_i32_0 = arith.constant 0 : i32
    %c0_i32_1 = arith.constant 0 : i32
    return %c0_i32, %c0_i32_0 : i32, i32
  }
  func.func @transform_14(%arg0: i32) -> (i32, i32) {
    %c0_i32 = arith.constant 0 : i32
    %c0_i32_0 = arith.constant 0 : i32
    %c0_i32_1 = arith.constant 0 : i32
    return %c0_i32, %c0_i32_0 : i32, i32
  }
  func.func @transform_15(%arg0: i32) -> (i32, i32) {
    %c0_i32 = arith.constant 0 : i32
    %c0_i32_0 = arith.constant 0 : i32
    return %c0_i32, %arg0 : i32, i32
  }
}

</mosaic_0001>

<llo_original>
// kernel: onsager_forward.1
$region0: #{onsager_forward.1}
  #allocation0 [shape = 'u32[]', space=smem, size = 0x4, offset = 0x4, fixed_abs, tag = 'smem constant byte address 0x4 - core index']
  #allocation1 [shape = 'u32[144,128]{1,0:T(1,128)}', space=vmem, size = 0x12000, scoped, tag = 'internal scratch']
  %s0 = inlined_call_operand.vmem [shape: f32[8,256], index: 0, kind: input, shape index: {}]
  %s1 = inlined_call_operand.vmem [shape: f32[48,8], index: 1, kind: input, shape index: {}]
  %s2 = inlined_call_operand.vmem [shape: f32[48,1], index: 2, kind: input, shape index: {}]
  %s3 = inlined_call_operand.vmem [shape: f32[32,32], index: 3, kind: input, shape index: {}]
  %s4 = inlined_call_operand.vmem [shape: f32[32,1], index: 4, kind: input, shape index: {}]
  %s5 = inlined_call_operand.vmem [shape: f32[72,32], index: 5, kind: input, shape index: {}]
  %s6 = inlined_call_operand.vmem [shape: f32[72,1], index: 6, kind: input, shape index: {}]
  %s7 = inlined_call_operand.vmem [shape: f32[40,8], index: 7, kind: input, shape index: {}]
  %s8 = inlined_call_operand.vmem [shape: f32[32,32], index: 8, kind: input, shape index: {}]
  %s9 = inlined_call_operand.vmem [shape: f32[8,32], index: 9, kind: input, shape index: {}]
  %s10 = inlined_call_operand.vmem [shape: f32[128,8], index: 10, kind: input, shape index: {}]
  %s11 = inlined_call_operand.vmem [shape: f32[16,64], index: 11, kind: input, shape index: {}]
  %s12 = inlined_call_operand.vmem [shape: f32[64,8], index: 12, kind: input, shape index: {}]
  %s13 = inlined_call_operand.vmem [shape: f32[8,64], index: 13, kind: input, shape index: {}]
  %s14 = inlined_call_operand.vmem [shape: f32[8,64], index: 14, kind: input, shape index: {}]
  %s15 = inlined_call_operand.hbm [shape: f32[8,256], index: 15, kind: output, shape index: {}]
  %s16 = sld [smem:[#allocation0]]
  $region93: #{onsager_forward.1} parent=0
    _
  %s18 = ssub.s32 1, %s16
  %s19 = scalar_select 0, %s18, %s16
  $region1: #{onsager_forward.1} parent=0
    #allocation2 [shape = 'u8[8192]{0}', space=vmem, size = 0x2000, scoped, tag = 'output window, operand 0']
    #allocation3 [shape = 's32[2]{0}', space=sflag, size = 0x8, scoped, tag = 'scoped memory for onsager_forward.1']
    %20 = vsyncpa [#allocation3], 0
    %s21 = scalar_lea.sflag [#allocation3], 1
    %22 = vsyncpa %s21, 0
    loop: start=0, step=1, limit=4
    $region2: #{onsager_forward.1} parent=1 // loop_pre_header
      _
    $region3: #{onsager_forward.1} parent=1 // loop_header
      %s24 = sphi 0, %s28
      %p25 = scmp.ge.s32.totalorder %s24, 4
      %s34 = sphi 0, %s36
      %s37 = sphi 0, %s34
      %s38 = sphi 0, %s37
      %s54 = sphi 0, %s38
      %s58 = sphi 0, %s58
      %s60 = sphi 0, %s58
      %s61 = sphi 0, %s60
      %s75 = sphi 0, %s61
      %s79 = sphi 0, %s79
      %s81 = sphi 0, %s79
      %s82 = sphi 0, %s81
      %s96 = sphi 0, %s82
      %s100 = sphi 0, %s100
      %s102 = sphi 0, %s100
      %s103 = sphi 0, %s102
      %s117 = sphi 0, %s103
      %s121 = sphi 0, %s121
      %s123 = sphi 0, %s121
      %s124 = sphi 0, %s123
      %s138 = sphi 0, %s124
      %s142 = sphi 0, %s142
      %s144 = sphi 0, %s142
      %s145 = sphi 0, %s144
      %s159 = sphi 0, %s145
      %s163 = sphi 0, %s163
      %s165 = sphi 0, %s163
      %s166 = sphi 0, %s165
      %s180 = sphi 0, %s166
      %s184 = sphi 0, %s184
      %s186 = sphi 0, %s184
      %s187 = sphi 0, %s186
      %s201 = sphi 0, %s187
      %s205 = sphi 0, %s205
      %s207 = sphi 0, %s205
      %s208 = sphi 0, %s207
      %s222 = sphi 0, %s208
      %s226 = sphi 0, %s226
      %s228 = sphi 0, %s226
      %s229 = sphi 0, %s228
      %s243 = sphi 0, %s229
      %s247 = sphi 0, %s247
      %s249 = sphi 0, %s247
      %s250 = sphi 0, %s249
      %s264 = sphi 0, %s250
      %s268 = sphi 0, %s268
      %s270 = sphi 0, %s268
      %s271 = sphi 0, %s270
      %s285 = sphi 0, %s271
      %s289 = sphi 0, %s289
      %s291 = sphi 0, %s289
      %s292 = sphi 0, %s291
      %s306 = sphi 0, %s292
      %s310 = sphi 0, %s310
      %s312 = sphi 0, %s310
      %s313 = sphi 0, %s312
      %s327 = sphi 0, %s313
      %s331 = sphi 0, %s331
      %s333 = sphi 0, %s331
      %s334 = sphi 0, %s333
      %s348 = sphi 0, %s334
      %s354 = sphi 0, %s356
      %s357 = sphi 0, %s354
      %s358 = sphi 0, %s357
      %s374 = sphi 0, %s358
    $region4: #{onsager_forward.1} parent=1 // loop_header_branch
      %27 = sbr.rel (%p25) target = $region8
    $region5: #{onsager_forward.1} parent=1 // loop_body
      %s29 = ssub.s32 %s24, 1
      %s30 = ssub.s32 %s24, 2
      %s31 = sadd.s32 %s24, 1
      %s32 = ssub.s32 %s24, %s31
      %p33 = scmp.eq.s32.totalorder %s32, 0
      %s35 = sadd.s32 %s34, 1
      %s36 = scalar_select %p33, %s34, %s35
      %p39 = pneg %p33
      %p40 = scmp.eq.s32.totalorder %s24, 1
      %p41 = por %p39, %p40
      %p42 = scmp.ne.s32.totalorder %s34, %s37
      %p43 = scmp.eq.s32.totalorder %s24, 0
      %p44 = por %p42, %p43
      %p45 = scmp.ne.s32.totalorder %s34, %s37
      %p46 = scmp.eq.s32.totalorder %s29, 1
      %p47 = por %p45, %p46
      %p48 = scmp.ne.s32.totalorder %s37, %s38
      %p49 = scmp.eq.s32.totalorder %s29, 0
      %p50 = por %p48, %p49
      %p51 = scmp.ne.s32.totalorder %s37, %s38
      %p52 = scmp.eq.s32.totalorder %s30, 1
      %p53 = por %p51, %p52
      %p55 = scmp.ne.s32.totalorder %s38, %s54
      %p56 = scmp.eq.s32.totalorder %s30, 0
      %p57 = por %p55, %p56
      %s59 = sadd.s32 %s58, 1
      %p62 = scmp.eq.s32.totalorder %s24, 1
      %p63 = scmp.ne.s32.totalorder %s58, %s60
      %p64 = scmp.eq.s32.totalorder %s24, 0
      %p65 = por %p63, %p64
      %p66 = scmp.ne.s32.totalorder %s58, %s60
      %p67 = scmp.eq.s32.totalorder %s29, 1
      %p68 = por %p66, %p67
      %p69 = scmp.ne.s32.totalorder %s60, %s61
      %p70 = scmp.eq.s32.totalorder %s29, 0
      %p71 = por %p69, %p70
      %p72 = scmp.ne.s32.totalorder %s60, %s61
      %p73 = scmp.eq.s32.totalorder %s30, 1
      %p74 = por %p72, %p73
      %p76 = scmp.ne.s32.totalorder %s61, %s75
      %p77 = scmp.eq.s32.totalorder %s30, 0
      %p78 = por %p76, %p77
      %s80 = sadd.s32 %s79, 1
      %p83 = scmp.eq.s32.totalorder %s24, 1
      %p84 = scmp.ne.s32.totalorder %s79, %s81
      %p85 = scmp.eq.s32.totalorder %s24, 0
      %p86 = por %p84, %p85
      %p87 = scmp.ne.s32.totalorder %s79, %s81
      %p88 = scmp.eq.s32.totalorder %s29, 1
      %p89 = por %p87, %p88
      %p90 = scmp.ne.s32.totalorder %s81, %s82
      %p91 = scmp.eq.s32.totalorder %s29, 0
      %p92 = por %p90, %p91
      %p93 = scmp.ne.s32.totalorder %s81, %s82
      %p94 = scmp.eq.s32.totalorder %s30, 1
      %p95 = por %p93, %p94
      %p97 = scmp.ne.s32.totalorder %s82, %s96
      %p98 = scmp.eq.s32.totalorder %s30, 0
      %p99 = por %p97, %p98
      %s101 = sadd.s32 %s100, 1
      %p104 = scmp.eq.s32.totalorder %s24, 1
      %p105 = scmp.ne.s32.totalorder %s100, %s102
      %p106 = scmp.eq.s32.totalorder %s24, 0
      %p107 = por %p105, %p106
      %p108 = scmp.ne.s32.totalorder %s100, %s102
      %p109 = scmp.eq.s32.totalorder %s29, 1
      %p110 = por %p108, %p109
      %p111 = scmp.ne.s32.totalorder %s102, %s103
      %p112 = scmp.eq.s32.totalorder %s29, 0
      %p113 = por %p111, %p112
      %p114 = scmp.ne.s32.totalorder %s102, %s103
      %p115 = scmp.eq.s32.totalorder %s30, 1
      %p116 = por %p114, %p115
      %p118 = scmp.ne.s32.totalorder %s103, %s117
      %p119 = scmp.eq.s32.totalorder %s30, 0
      %p120 = por %p118, %p119
      %s122 = sadd.s32 %s121, 1
      %p125 = scmp.eq.s32.totalorder %s24, 1
      %p126 = scmp.ne.s32.totalorder %s121, %s123
      %p127 = scmp.eq.s32.totalorder %s24, 0
      %p128 = por %p126, %p127
      %p129 = scmp.ne.s32.totalorder %s121, %s123
      %p130 = scmp.eq.s32.totalorder %s29, 1
      %p131 = por %p129, %p130
      %p132 = scmp.ne.s32.totalorder %s123, %s124
      %p133 = scmp.eq.s32.totalorder %s29, 0
      %p134 = por %p132, %p133
      %p135 = scmp.ne.s32.totalorder %s123, %s124
      %p136 = scmp.eq.s32.totalorder %s30, 1
      %p137 = por %p135, %p136
      %p139 = scmp.ne.s32.totalorder %s124, %s138
      %p140 = scmp.eq.s32.totalorder %s30, 0
      %p141 = por %p139, %p140
      %s143 = sadd.s32 %s142, 1
      %p146 = scmp.eq.s32.totalorder %s24, 1
      %p147 = scmp.ne.s32.totalorder %s142, %s144
      %p148 = scmp.eq.s32.totalorder %s24, 0
      %p149 = por %p147, %p148
      %p150 = scmp.ne.s32.totalorder %s142, %s144
      %p151 = scmp.eq.s32.totalorder %s29, 1
      %p152 = por %p150, %p151
      %p153 = scmp.ne.s32.totalorder %s144, %s145
      %p154 = scmp.eq.s32.totalorder %s29, 0
      %p155 = por %p153, %p154
      %p156 = scmp.ne.s32.totalorder %s144, %s145
      %p157 = scmp.eq.s32.totalorder %s30, 1
      %p158 = por %p156, %p157
      %p160 = scmp.ne.s32.totalorder %s145, %s159
      %p161 = scmp.eq.s32.totalorder %s30, 0
      %p162 = por %p160, %p161
      %s164 = sadd.s32 %s163, 1
      %p167 = scmp.eq.s32.totalorder %s24, 1
      %p168 = scmp.ne.s32.totalorder %s163, %s165
      %p169 = scmp.eq.s32.totalorder %s24, 0
      %p170 = por %p168, %p169
      %p171 = scmp.ne.s32.totalorder %s163, %s165
      %p172 = scmp.eq.s32.totalorder %s29, 1
      %p173 = por %p171, %p172
      %p174 = scmp.ne.s32.totalorder %s165, %s166
      %p175 = scmp.eq.s32.totalorder %s29, 0
      %p176 = por %p174, %p175
      %p177 = scmp.ne.s32.totalorder %s165, %s166
      %p178 = scmp.eq.s32.totalorder %s30, 1
      %p179 = por %p177, %p178
      %p181 = scmp.ne.s32.totalorder %s166, %s180
      %p182 = scmp.eq.s32.totalorder %s30, 0
      %p183 = por %p181, %p182
      %s185 = sadd.s32 %s184, 1
      %p188 = scmp.eq.s32.totalorder %s24, 1
      %p189 = scmp.ne.s32.totalorder %s184, %s186
      %p190 = scmp.eq.s32.totalorder %s24, 0
      %p191 = por %p189, %p190
      %p192 = scmp.ne.s32.totalorder %s184, %s186
      %p193 = scmp.eq.s32.totalorder %s29, 1
      %p194 = por %p192, %p193
      %p195 = scmp.ne.s32.totalorder %s186, %s187
      %p196 = scmp.eq.s32.totalorder %s29, 0
      %p197 = por %p195, %p196
      %p198 = scmp.ne.s32.totalorder %s186, %s187
      %p199 = scmp.eq.s32.totalorder %s30, 1
      %p200 = por %p198, %p199
      %p202 = scmp.ne.s32.totalorder %s187, %s201
      %p203 = scmp.eq.s32.totalorder %s30, 0
      %p204 = por %p202, %p203
      %s206 = sadd.s32 %s205, 1
      %p209 = scmp.eq.s32.totalorder %s24, 1
      %p210 = scmp.ne.s32.totalorder %s205, %s207
      %p211 = scmp.eq.s32.totalorder %s24, 0
      %p212 = por %p210, %p211
      %p213 = scmp.ne.s32.totalorder %s205, %s207
      %p214 = scmp.eq.s32.totalorder %s29, 1
      %p215 = por %p213, %p214
      %p216 = scmp.ne.s32.totalorder %s207, %s208
      %p217 = scmp.eq.s32.totalorder %s29, 0
      %p218 = por %p216, %p217
      %p219 = scmp.ne.s32.totalorder %s207, %s208
      %p220 = scmp.eq.s32.totalorder %s30, 1
      %p221 = por %p219, %p220
      %p223 = scmp.ne.s32.totalorder %s208, %s222
      %p224 = scmp.eq.s32.totalorder %s30, 0
      %p225 = por %p223, %p224
      %s227 = sadd.s32 %s226, 1
      %p230 = scmp.eq.s32.totalorder %s24, 1
      %p231 = scmp.ne.s32.totalorder %s226, %s228
      %p232 = scmp.eq.s32.totalorder %s24, 0
      %p233 = por %p231, %p232
      %p234 = scmp.ne.s32.totalorder %s226, %s228
      %p235 = scmp.eq.s32.totalorder %s29, 1
      %p236 = por %p234, %p235
      %p237 = scmp.ne.s32.totalorder %s228, %s229
      %p238 = scmp.eq.s32.totalorder %s29, 0
      %p239 = por %p237, %p238
      %p240 = scmp.ne.s32.totalorder %s228, %s229
      %p241 = scmp.eq.s32.totalorder %s30, 1
      %p242 = por %p240, %p241
      %p244 = scmp.ne.s32.totalorder %s229, %s243
      %p245 = scmp.eq.s32.totalorder %s30, 0
      %p246 = por %p244, %p245
      %s248 = sadd.s32 %s247, 1
      %p251 = scmp.eq.s32.totalorder %s24, 1
      %p252 = scmp.ne.s32.totalorder %s247, %s249
      %p253 = scmp.eq.s32.totalorder %s24, 0
      %p254 = por %p252, %p253
      %p255 = scmp.ne.s32.totalorder %s247, %s249
      %p256 = scmp.eq.s32.totalorder %s29, 1
      %p257 = por %p255, %p256
      %p258 = scmp.ne.s32.totalorder %s249, %s250
      %p259 = scmp.eq.s32.totalorder %s29, 0
      %p260 = por %p258, %p259
      %p261 = scmp.ne.s32.totalorder %s249, %s250
      %p262 = scmp.eq.s32.totalorder %s30, 1
      %p263 = por %p261, %p262
      %p265 = scmp.ne.s32.totalorder %s250, %s264
      %p266 = scmp.eq.s32.totalorder %s30, 0
      %p267 = por %p265, %p266
      %s269 = sadd.s32 %s268, 1
      %p272 = scmp.eq.s32.totalorder %s24, 1
      %p273 = scmp.ne.s32.totalorder %s268, %s270
      %p274 = scmp.eq.s32.totalorder %s24, 0
      %p275 = por %p273, %p274
      %p276 = scmp.ne.s32.totalorder %s268, %s270
      %p277 = scmp.eq.s32.totalorder %s29, 1
      %p278 = por %p276, %p277
      %p279 = scmp.ne.s32.totalorder %s270, %s271
      %p280 = scmp.eq.s32.totalorder %s29, 0
      %p281 = por %p279, %p280
      %p282 = scmp.ne.s32.totalorder %s270, %s271
      %p283 = scmp.eq.s32.totalorder %s30, 1
      %p284 = por %p282, %p283
      %p286 = scmp.ne.s32.totalorder %s271, %s285
      %p287 = scmp.eq.s32.totalorder %s30, 0
      %p288 = por %p286, %p287
      %s290 = sadd.s32 %s289, 1
      %p293 = scmp.eq.s32.totalorder %s24, 1
      %p294 = scmp.ne.s32.totalorder %s289, %s291
      %p295 = scmp.eq.s32.totalorder %s24, 0
      %p296 = por %p294, %p295
      %p297 = scmp.ne.s32.totalorder %s289, %s291
      %p298 = scmp.eq.s32.totalorder %s29, 1
      %p299 = por %p297, %p298
      %p300 = scmp.ne.s32.totalorder %s291, %s292
      %p301 = scmp.eq.s32.totalorder %s29, 0
      %p302 = por %p300, %p301
      %p303 = scmp.ne.s32.totalorder %s291, %s292
      %p304 = scmp.eq.s32.totalorder %s30, 1
      %p305 = por %p303, %p304
      %p307 = scmp.ne.s32.totalorder %s292, %s306
      %p308 = scmp.eq.s32.totalorder %s30, 0
      %p309 = por %p307, %p308
      %s311 = sadd.s32 %s310, 1
      %p314 = scmp.eq.s32.totalorder %s24, 1
      %p315 = scmp.ne.s32.totalorder %s310, %s312
      %p316 = scmp.eq.s32.totalorder %s24, 0
      %p317 = por %p315, %p316
      %p318 = scmp.ne.s32.totalorder %s310, %s312
      %p319 = scmp.eq.s32.totalorder %s29, 1
      %p320 = por %p318, %p319
      %p321 = scmp.ne.s32.totalorder %s312, %s313
      %p322 = scmp.eq.s32.totalorder %s29, 0
      %p323 = por %p321, %p322
      %p324 = scmp.ne.s32.totalorder %s312, %s313
      %p325 = scmp.eq.s32.totalorder %s30, 1
      %p326 = por %p324, %p325
      %p328 = scmp.ne.s32.totalorder %s313, %s327
      %p329 = scmp.eq.s32.totalorder %s30, 0
      %p330 = por %p328, %p329
      %s332 = sadd.s32 %s331, 1
      %p335 = scmp.eq.s32.totalorder %s24, 1
      %p336 = scmp.ne.s32.totalorder %s331, %s333
      %p337 = scmp.eq.s32.totalorder %s24, 0
      %p338 = por %p336, %p337
      %p339 = scmp.ne.s32.totalorder %s331, %s333
      %p340 = scmp.eq.s32.totalorder %s29, 1
      %p341 = por %p339, %p340
      %p342 = scmp.ne.s32.totalorder %s333, %s334
      %p343 = scmp.eq.s32.totalorder %s29, 0
      %p344 = por %p342, %p343
      %p345 = scmp.ne.s32.totalorder %s333, %s334
      %p346 = scmp.eq.s32.totalorder %s30, 1
      %p347 = por %p345, %p346
      %p349 = scmp.ne.s32.totalorder %s334, %s348
      %p350 = scmp.eq.s32.totalorder %s30, 0
      %p351 = por %p349, %p350
      %s352 = ssub.s32 %s24, %s31
      %p353 = scmp.eq.s32.totalorder %s352, 0
      %s355 = sadd.s32 %s354, 1
      %s356 = scalar_select %p353, %s354, %s355
      %p359 = pneg %p353
      %p360 = scmp.eq.s32.totalorder %s24, 1
      %p361 = por %p359, %p360
      %p362 = scmp.ne.s32.totalorder %s354, %s357
      %p363 = scmp.eq.s32.totalorder %s24, 0
      %p364 = por %p362, %p363
      %p365 = scmp.ne.s32.totalorder %s354, %s357
      %p366 = scmp.eq.s32.totalorder %s29, 1
      %p367 = por %p365, %p366
      %p368 = scmp.ne.s32.totalorder %s357, %s358
      %p369 = scmp.eq.s32.totalorder %s29, 0
      %p370 = por %p368, %p369
      %p371 = scmp.ne.s32.totalorder %s357, %s358
      %p372 = scmp.eq.s32.totalorder %s30, 1
      %p373 = por %p371, %p372
      %p375 = scmp.ne.s32.totalorder %s358, %s374
      %p376 = scmp.eq.s32.totalorder %s30, 0
      %p377 = por %p375, %p376
      %p378 = scmp.le.s32.totalorder 1, %s24
      %p379 = scmp.lt.s32.totalorder %s24, 3
      %p380 = pnand %p378, %p379
      %p381 = pneg %p380
      // Predicated region
      $region9: #{onsager_forward.1} parent=5 // pred_check
        _
      $region10: #{onsager_forward.1} parent=5 // pred_check_branch
        %383 = sbr.rel (%p380) target = $region12
      $region11: #{onsager_forward.1} parent=5 // pred_region
        %s384 = ssub.s32 %s24, 1
        // Predicated region
        $region13: #{onsager_forward.1} parent=11 // pred_check
          %p385 = pneg %p71
        $region14: #{onsager_forward.1} parent=11 // pred_check_branch
          %387 = sbr.rel (%p385) target = $region16
        $region15: #{onsager_forward.1} parent=11 // pred_region
          _
        $region16: #{onsager_forward.1} parent=11 // pred_fallthru
          _
        // Predicated region
        $region17: #{onsager_forward.1} parent=11 // pred_check
          %p388 = pneg %p92
        $region18: #{onsager_forward.1} parent=11 // pred_check_branch
          %390 = sbr.rel (%p388) target = $region20
        $region19: #{onsager_forward.1} parent=11 // pred_region
          _
        $region20: #{onsager_forward.1} parent=11 // pred_fallthru
          _
        // Predicated region
        $region21: #{onsager_forward.1} parent=11 // pred_check
          %p391 = pneg %p113
        $region22: #{onsager_forward.1} parent=11 // pred_check_branch
          %393 = sbr.rel (%p391) target = $region24
        $region23: #{onsager_forward.1} parent=11 // pred_region
          _
        $region24: #{onsager_forward.1} parent=11 // pred_fallthru
          _
        // Predicated region
        $region25: #{onsager_forward.1} parent=11 // pred_check
          %p394 = pneg %p134
        $region26: #{onsager_forward.1} parent=11 // pred_check_branch
          %396 = sbr.rel (%p394) target = $region28
        $region27: #{onsager_forward.1} parent=11 // pred_region
          _
        $region28: #{onsager_forward.1} parent=11 // pred_fallthru
          _
        // Predicated region
        $region29: #{onsager_forward.1} parent=11 // pred_check
          %p397 = pneg %p155
        $region30: #{onsager_forward.1} parent=11 // pred_check_branch
          %399 = sbr.rel (%p397) target = $region32
        $region31: #{onsager_forward.1} parent=11 // pred_region
          _
        $region32: #{onsager_forward.1} parent=11 // pred_fallthru
          _
        // Predicated region
        $region33: #{onsager_forward.1} parent=11 // pred_check
          %p400 = pneg %p176
        $region34: #{onsager_forward.1} parent=11 // pred_check_branch
          %402 = sbr.rel (%p400) target = $region36
        $region35: #{onsager_forward.1} parent=11 // pred_region
          _
        $region36: #{onsager_forward.1} parent=11 // pred_fallthru
          _
        // Predicated region
        $region37: #{onsager_forward.1} parent=11 // pred_check
          %p403 = pneg %p197
        $region38: #{onsager_forward.1} parent=11 // pred_check_branch
          %405 = sbr.rel (%p403) target = $region40
        $region39: #{onsager_forward.1} parent=11 // pred_region
          _
        $region40: #{onsager_forward.1} parent=11 // pred_fallthru
          _
        // Predicated region
        $region41: #{onsager_forward.1} parent=11 // pred_check
          %p406 = pneg %p218
        $region42: #{onsager_forward.1} parent=11 // pred_check_branch
          %408 = sbr.rel (%p406) target = $region44
        $region43: #{onsager_forward.1} parent=11 // pred_region
          _
        $region44: #{onsager_forward.1} parent=11 // pred_fallthru
          _
        // Predicated region
        $region45: #{onsager_forward.1} parent=11 // pred_check
          %p409 = pneg %p239
        $region46: #{onsager_forward.1} parent=11 // pred_check_branch
          %411 = sbr.rel (%p409) target = $region48
        $region47: #{onsager_forward.1} parent=11 // pred_region
          _
        $region48: #{onsager_forward.1} parent=11 // pred_fallthru
          _
        // Predicated region
        $region49: #{onsager_forward.1} parent=11 // pred_check
          %p412 = pneg %p260
        $region50: #{onsager_forward.1} parent=11 // pred_check_branch
          %414 = sbr.rel (%p412) target = $region52
        $region51: #{onsager_forward.1} parent=11 // pred_region
          _
        $region52: #{onsager_forward.1} parent=11 // pred_fallthru
          _
        // Predicated region
        $region53: #{onsager_forward.1} parent=11 // pred_check
          %p415 = pneg %p281
        $region54: #{onsager_forward.1} parent=11 // pred_check_branch
          %417 = sbr.rel (%p415) target = $region56
        $region55: #{onsager_forward.1} parent=11 // pred_region
          _
        $region56: #{onsager_forward.1} parent=11 // pred_fallthru
          _
        // Predicated region
        $region57: #{onsager_forward.1} parent=11 // pred_check
          %p418 = pneg %p302
        $region58: #{onsager_forward.1} parent=11 // pred_check_branch
          %420 = sbr.rel (%p418) target = $region60
        $region59: #{onsager_forward.1} parent=11 // pred_region
          _
        $region60: #{onsager_forward.1} parent=11 // pred_fallthru
          _
        // Predicated region
        $region61: #{onsager_forward.1} parent=11 // pred_check
          %p421 = pneg %p323
        $region62: #{onsager_forward.1} parent=11 // pred_check_branch
          %423 = sbr.rel (%p421) target = $region64
        $region63: #{onsager_forward.1} parent=11 // pred_region
          _
        $region64: #{onsager_forward.1} parent=11 // pred_fallthru
          _
        // Predicated region
        $region65: #{onsager_forward.1} parent=11 // pred_check
          %p424 = pneg %p344
        $region66: #{onsager_forward.1} parent=11 // pred_check_branch
          %426 = sbr.rel (%p424) target = $region68
        $region67: #{onsager_forward.1} parent=11 // pred_region
          _
        $region68: #{onsager_forward.1} parent=11 // pred_fallthru
          _
      $region12: #{onsager_forward.1} parent=5 // pred_fallthru
        _
      %p427 = scmp.lt.s32.totalorder %s24, 2
      // Predicated region
      $region69: #{onsager_forward.1} parent=5 // pred_check
        %p428 = pneg %p427
      $region70: #{onsager_forward.1} parent=5 // pred_check_branch
        %430 = sbr.rel (%p428) target = $region72
      $region71: #{onsager_forward.1} parent=5 // pred_region
        // Predicated region
        $region73: #{onsager_forward.1} parent=71 // pred_check
          %p431 = pneg %p44
        $region74: #{onsager_forward.1} parent=71 // pred_check_branch
          %433 = sbr.rel (%p431) target = $region76
        $region75: #{onsager_forward.1} parent=71 // pred_region
          %p434 = scmp.lt.s32.totalorder %s24, 1
          %s435 = scalar_select %p434, %s24, 1
          %s436 = smul.addr %s435, 8
          %s437 = scalar_lea.vmem %s0, %s436
        $region76: #{onsager_forward.1} parent=71 // pred_fallthru
          _
      $region72: #{onsager_forward.1} parent=5 // pred_fallthru
        _
      %p438 = scmp.le.s32.totalorder 1, %s24
      %p439 = scmp.lt.s32.totalorder %s24, 3
      %p440 = pnand %p438, %p439
      %p441 = pneg %p440
      // Predicated region
      $region77: #{onsager_forward.1} parent=5 // pred_check
        _
      $region78: #{onsager_forward.1} parent=5 // pred_check_branch
        %443 = sbr.rel (%p440) target = $region80
      $region79: #{onsager_forward.1} parent=5 // pred_region
        %s444 = ssub.s32 %s24, 1
        %p445 = scmp.lt.s32.totalorder %s29, 1
        %s446 = scalar_select %p445, %s29, 1
        %s447 = smul.addr %s446, 8
        %s448 = scalar_lea.vmem %s0, %s447
        %p449 = pneg %p50
        %p450 = pneg %p47
        %p451 = pneg %p71
        %p452 = pneg %p68
        %p453 = pneg %p92
        %p454 = pneg %p89
        %p455 = pneg %p113
        %p456 = pneg %p110
        %p457 = pneg %p134
        %p458 = pneg %p131
        %p459 = pneg %p155
        %p460 = pneg %p152
        %p461 = pneg %p176
        %p462 = pneg %p173
        %p463 = pneg %p197
        %p464 = pneg %p194
        %p465 = pneg %p218
        %p466 = pneg %p215
        %p467 = pneg %p239
        %p468 = pneg %p236
        %p469 = pneg %p260
        %p470 = pneg %p257
        %p471 = pneg %p281
        %p472 = pneg %p278
        %p473 = pneg %p302
        %p474 = pneg %p299
        %p475 = pneg %p323
        %p476 = pneg %p320
        %p477 = pneg %p344
        %p478 = pneg %p341
        %p479 = pneg %p370
        %p480 = pneg %p367
        %s481 = sand.u32 %s357, 1
        %s482 = scalar_lea.sflag [#allocation3], %s481
        %s483 = sand.u32 %s357, 1
        %s484 = smul.addr %s483, 8
        %s485 = scalar_lea.vmem [#allocation2], %s484
        %p486 = scmp.lt.s32.totalorder %s29, 1
        %s487 = scalar_select %p486, %s29, 1
        %s488 = smul.addr %s487, 8
        %s489 = scalar_lea.vmem %s0, %s488
        %v490 = vld [vmem:[%s489] sm:$0xff]
        %v491 = vld [vmem:[%s1] sm:$0xff]
        %v492 = vld [vmem:[%s1 + $0x8] sm:$0xff]
        %v493 = vld [vmem:[%s1 + $0x10] sm:$0xff]
        %v494 = vld [vmem:[%s1 + $0x18] sm:$0xff]
        %v495 = vld [vmem:[%s1 + $0x20] sm:$0xff]
        %v496 = vld [vmem:[%s1 + $0x28] sm:$0xff]
        %v497 = vld [vmem:[%s2] sm:$0xff]
        %v498 = vld [vmem:[%s2 + $0x8] sm:$0xff]
        %v499 = vld [vmem:[%s2 + $0x10] sm:$0xff]
        %v500 = vld [vmem:[%s2 + $0x18] sm:$0xff]
        %v501 = vld [vmem:[%s2 + $0x20] sm:$0xff]
        %v502 = vld [vmem:[%s2 + $0x28] sm:$0xff]
        %504 = vset.pattern.permute.xlu0 0
        %505 = vperm.xlu0 %504, %v497
        %v506 = vpop.permute.xlu0 %505
        %509 = vset.pattern.permute.xlu0 0
        %510 = vperm.xlu0 %509, %v498
        %v511 = vpop.permute.xlu0 %510
        %514 = vset.pattern.permute.xlu0 0
        %515 = vperm.xlu0 %514, %v499
        %v516 = vpop.permute.xlu0 %515
        %519 = vset.pattern.permute.xlu0 0
        %520 = vperm.xlu0 %519, %v500
        %v521 = vpop.permute.xlu0 %520
        %524 = vset.pattern.permute.xlu0 0
        %525 = vperm.xlu0 %524, %v501
        %v526 = vpop.permute.xlu0 %525
        %529 = vset.pattern.permute.xlu0 0
        %530 = vperm.xlu0 %529, %v502
        %v531 = vpop.permute.xlu0 %530
        %vm533 = vcmask 64512
        %v535 = vsel %vm533, %v491, 0
        %v538 = vsel %vm533, %v492, 0
        %v541 = vsel %vm533, %v493, 0
        %v544 = vsel %vm533, %v494, 0
        %v547 = vsel %vm533, %v495, 0
        %v550 = vsel %vm533, %v496, 0
        %552 = vmatprep.subr.mxu0 0.0
        %553 = vmatpush1.msra.mxu0 %v490
        %554 = vmatprep.subr.mxu0 0.0
        %555 = vmatpush1.msra.mxu0 0.0
        %556 = vmatprep.subr.mxu0 0.0
        %557 = vmatpush1.msra.mxu0 0.0
        %558 = vmatprep.subr.mxu0 0.0
        %559 = vmatpush1.msra.mxu0 0.0
        %560 = vmatprep.subr.mxu0 0.0
        %561 = vmatpush1.msra.mxu0 0.0
        %562 = vmatprep.subr.mxu0 0.0
        %563 = vmatpush1.msra.mxu0 0.0
        %564 = vmatprep.subr.mxu0 0.0
        %565 = vmatpush1.msra.mxu0 0.0
        %566 = vmatprep.subr.mxu0 0.0
        %567 = vmatpush1.msra.mxu0 0.0
        %568 = vmatprep.subr.mxu0 0.0
        %569 = vmatpush1.msra.mxu0 0.0
        %570 = vmatprep.subr.mxu0 0.0
        %571 = vmatpush1.msra.mxu0 0.0
        %572 = vmatprep.subr.mxu0 0.0
        %573 = vmatpush1.msra.mxu0 0.0
        %574 = vmatprep.subr.mxu0 0.0
        %575 = vmatpush1.msra.mxu0 0.0
        %576 = vmatprep.subr.mxu0 0.0
        %577 = vmatpush1.msra.mxu0 0.0
        %578 = vmatprep.subr.mxu0 0.0
        %579 = vmatpush1.msra.mxu0 0.0
        %580 = vmatprep.subr.mxu0 0.0
        %581 = vmatpush1.msra.mxu0 0.0
        %582 = vmatprep.subr.mxu0 0.0
        %583 = vmatpush1.msra.mxu0 0.0
        %584 = vmatprep.subr.mxu0 0.0
        %585 = vmatpush1.msra.mxu0 0.0
        %586 = vmatprep.subr.mxu0 0.0
        %587 = vmatpush1.msra.mxu0 0.0
        %588 = vmatprep.subr.mxu0 0.0
        %589 = vmatpush1.msra.mxu0 0.0
        %590 = vmatprep.subr.mxu0 0.0
        %591 = vmatpush1.msra.mxu0 0.0
        %592 = vmatprep.subr.mxu0 0.0
        %593 = vmatpush1.msra.mxu0 0.0
        %594 = vmatprep.subr.mxu0 0.0
        %595 = vmatpush1.msra.mxu0 0.0
        %596 = vmatprep.subr.mxu0 0.0
        %597 = vmatpush1.msra.mxu0 0.0
        %598 = vmatprep.subr.mxu0 0.0
        %599 = vmatpush1.msra.mxu0 0.0
        %600 = vmatprep.subr.mxu0 0.0
        %601 = vmatpush1.msra.mxu0 0.0
        %602 = vmatprep.subr.mxu0 0.0
        %603 = vmatpush1.msra.mxu0 0.0
        %604 = vmatprep.subr.mxu0 0.0
        %605 = vmatpush1.msra.mxu0 0.0
        %606 = vmatprep.subr.mxu0 0.0
        %607 = vmatpush1.msra.mxu0 0.0
        %608 = vmatprep.subr.mxu0 0.0
        %609 = vmatpush1.msra.mxu0 0.0
        %610 = vmatprep.subr.mxu0 0.0
        %611 = vmatpush1.msra.mxu0 0.0
        %612 = vmatprep.subr.mxu0 0.0
        %613 = vmatpush1.msra.mxu0 0.0
        %614 = vmatprep.subr.mxu0 0.0
        %615 = vmatpush1.msra.mxu0 0.0
        %616 = vmatprep.mubr.f32.mxu0 0.0
        %617 = vmatmul.mubr.f32.gmra.mrb[0].mxu0 %v535
        %v618 = vpop.f32.mrb[0].mxu0
        %v619 = vadd.f32 %v506, %v618
        %v620 = vpop.f32.mrb[0].mxu0
        %621 = vmatprep.mubr.f32.mxu0 0.0
        %622 = vmatmul.mubr.f32.gmra.mrb[0].mxu0 %v538
        %v623 = vpop.f32.mrb[0].mxu0
        %v624 = vadd.f32 %v511, %v623
        %v625 = vpop.f32.mrb[0].mxu0
        %626 = vmatprep.mubr.f32.mxu0 0.0
        %627 = vmatmul.mubr.f32.gmra.mrb[0].mxu0 %v541
        %v628 = vpop.f32.mrb[0].mxu0
        %v629 = vadd.f32 %v516, %v628
        %v630 = vpop.f32.mrb[0].mxu0
        %631 = vmatprep.mubr.f32.mxu0 0.0
        %632 = vmatmul.mubr.f32.gmra.mrb[0].mxu0 %v544
        %v633 = vpop.f32.mrb[0].mxu0
        %v634 = vadd.f32 %v521, %v633
        %v635 = vpop.f32.mrb[0].mxu0
        %636 = vmatprep.mubr.f32.mxu0 0.0
        %637 = vmatmul.mubr.f32.gmra.mrb[0].mxu0 %v547
        %v638 = vpop.f32.mrb[0].mxu0
        %v639 = vadd.f32 %v526, %v638
        %v640 = vpop.f32.mrb[0].mxu0
        %641 = vmatprep.mubr.f32.mxu0 0.0
        %642 = vmatmul.mubr.f32.gmra.mrb[0].mxu0 %v550
        %v643 = vpop.f32.mrb[0].mxu0
        %v644 = vadd.f32 %v531, %v643
        %v645 = vpop.f32.mrb[0].mxu0
        %646 = vdwg.mxu0
        %v647 = vmax.f32 %v619, 0.0
        %v648 = vmax.f32 %v624, 0.0
        %v649 = vmax.f32 %v629, 0.0
        %v650 = vmax.f32 %v634, 0.0
        %v651 = vsub.f32 %v619, 0.5
        %v652 = vsub.f32 %v624, 0.5
        %v653 = vsub.f32 %v629, 0.5
        %v654 = vsub.f32 %v634, 0.5
        %v655 = vmax.f32 %v651, 0.0
        %v656 = vmax.f32 %v652, 0.0
        %v657 = vmax.f32 %v653, 0.0
        %v658 = vmax.f32 %v654, 0.0
        %v659 = vmul.f32 %v647, %v647
        %v660 = vmul.f32 %v648, %v648
        %v661 = vmul.f32 %v649, %v649
        %v662 = vmul.f32 %v650, %v650
        %v663 = vmul.f32 %v655, %v655
        %v664 = vmul.f32 %v656, %v656
        %v665 = vmul.f32 %v657, %v657
        %v666 = vmul.f32 %v658, %v658
        %v667 = vsub.f32 %v659, %v663
        %v668 = vsub.f32 %v660, %v664
        %v669 = vsub.f32 %v661, %v665
        %v670 = vsub.f32 %v662, %v666
        %v671 = vld [vmem:[%s3] sm:$0xff]
        %v672 = vld [vmem:[%s3 + $0x8] sm:$0xff]
        %v673 = vld [vmem:[%s3 + $0x10] sm:$0xff]
        %v674 = vld [vmem:[%s3 + $0x18] sm:$0xff]
        %v675 = vld [vmem:[%s4] sm:$0xff]
        %v676 = vld [vmem:[%s4 + $0x8] sm:$0xff]
        %v677 = vld [vmem:[%s4 + $0x10] sm:$0xff]
        %v678 = vld [vmem:[%s4 + $0x18] sm:$0xff]
        %680 = vset.pattern.permute.xlu0 0
        %681 = vperm.xlu0 %680, %v675
        %v682 = vpop.permute.xlu0 %681
        %685 = vset.pattern.permute.xlu0 0
        %686 = vperm.xlu0 %685, %v676
        %v687 = vpop.permute.xlu0 %686
        %690 = vset.pattern.permute.xlu0 0
        %691 = vperm.xlu0 %690, %v677
        %v692 = vpop.permute.xlu0 %691
        %695 = vset.pattern.permute.xlu0 0
        %696 = vperm.xlu0 %695, %v678
        %v697 = vpop.permute.xlu0 %696
        %vm699 = vcmask 261120
        %v701 = vsel %vm699, %v671, 0
        %v704 = vsel %vm699, %v672, 0
        %v707 = vsel %vm699, %v673, 0
        %v710 = vsel %vm699, %v674, 0
        %712 = vmatprep.subr.mxu0 0.0
        %713 = vmatpush1.msra.mxu0 %v667
        %714 = vmatprep.subr.mxu0 0.0
        %715 = vmatpush1.msra.mxu0 %v668
        %716 = vmatprep.subr.mxu0 0.0
        %717 = vmatpush1.msra.mxu0 %v669
        %718 = vmatprep.subr.mxu0 0.0
        %719 = vmatpush1.msra.mxu0 %v670
        %720 = vmatprep.subr.mxu0 0.0
        %721 = vmatpush1.msra.mxu0 0.0
        %722 = vmatprep.subr.mxu0 0.0
        %723 = vmatpush1.msra.mxu0 0.0
        %724 = vmatprep.subr.mxu0 0.0
        %725 = vmatpush1.msra.mxu0 0.0
        %726 = vmatprep.subr.mxu0 0.0
        %727 = vmatpush1.msra.mxu0 0.0
        %728 = vmatprep.subr.mxu0 0.0
        %729 = vmatpush1.msra.mxu0 0.0
        %730 = vmatprep.subr.mxu0 0.0
        %731 = vmatpush1.msra.mxu0 0.0
        %732 = vmatprep.subr.mxu0 0.0
        %733 = vmatpush1.msra.mxu0 0.0
        %734 = vmatprep.subr.mxu0 0.0
        %735 = vmatpush1.msra.mxu0 0.0
        %736 = vmatprep.subr.mxu0 0.0
        %737 = vmatpush1.msra.mxu0 0.0
        %738 = vmatprep.subr.mxu0 0.0
        %739 = vmatpush1.msra.mxu0 0.0
        %740 = vmatprep.subr.mxu0 0.0
        %741 = vmatpush1.msra.mxu0 0.0
        %742 = vmatprep.subr.mxu0 0.0
        %743 = vmatpush1.msra.mxu0 0.0
        %744 = vmatprep.subr.mxu0 0.0
        %745 = vmatpush1.msra.mxu0 0.0
        %746 = vmatprep.subr.mxu0 0.0
        %747 = vmatpush1.msra.mxu0 0.0
        %748 = vmatprep.subr.mxu0 0.0
        %749 = vmatpush1.msra.mxu0 0.0
        %750 = vmatprep.subr.mxu0 0.0
        %751 = vmatpush1.msra.mxu0 0.0
        %752 = vmatprep.subr.mxu0 0.0
        %753 = vmatpush1.msra.mxu0 0.0
        %754 = vmatprep.subr.mxu0 0.0
        %755 = vmatpush1.msra.mxu0 0.0
        %756 = vmatprep.subr.mxu0 0.0
        %757 = vmatpush1.msra.mxu0 0.0
        %758 = vmatprep.subr.mxu0 0.0
        %759 = vmatpush1.msra.mxu0 0.0
        %760 = vmatprep.subr.mxu0 0.0
        %761 = vmatpush1.msra.mxu0 0.0
        %762 = vmatprep.subr.mxu0 0.0
        %763 = vmatpush1.msra.mxu0 0.0
        %764 = vmatprep.subr.mxu0 0.0
        %765 = vmatpush1.msra.mxu0 0.0
        %766 = vmatprep.subr.mxu0 0.0
        %767 = vmatpush1.msra.mxu0 0.0
        %768 = vmatprep.subr.mxu0 0.0
        %769 = vmatpush1.msra.mxu0 0.0
        %770 = vmatprep.subr.mxu0 0.0
        %771 = vmatpush1.msra.mxu0 0.0
        %772 = vmatprep.subr.mxu0 0.0
        %773 = vmatpush1.msra.mxu0 0.0
        %774 = vmatprep.subr.mxu0 0.0
        %775 = vmatpush1.msra.mxu0 0.0
        %776 = vmatprep.mubr.f32.mxu0 0.0
        %777 = vmatmul.mubr.f32.gmra.mrb[0].mxu0 %v701
        %v778 = vpop.f32.mrb[0].mxu0
        %v779 = vadd.f32 %v682, %v778
        %v780 = vpop.f32.mrb[0].mxu0
        %781 = vmatprep.mubr.f32.mxu0 0.0
        %782 = vmatmul.mubr.f32.gmra.mrb[0].mxu0 %v704
        %v783 = vpop.f32.mrb[0].mxu0
        %v784 = vadd.f32 %v687, %v783
        %v785 = vpop.f32.mrb[0].mxu0
        %786 = vmatprep.mubr.f32.mxu0 0.0
        %787 = vmatmul.mubr.f32.gmra.mrb[0].mxu0 %v707
        %v788 = vpop.f32.mrb[0].mxu0
        %v789 = vadd.f32 %v692, %v788
        %v790 = vpop.f32.mrb[0].mxu0
        %791 = vmatprep.mubr.f32.mxu0 0.0
        %792 = vmatmul.mubr.f32.gmra.mrb[0].mxu0 %v710
        %v793 = vpop.f32.mrb[0].mxu0
        %v794 = vadd.f32 %v697, %v793
        %v795 = vpop.f32.mrb[0].mxu0
        %796 = vdwg.mxu0
        %v797 = vmax.f32 %v779, 0.0
        %v798 = vmax.f32 %v784, 0.0
        %v799 = vmax.f32 %v789, 0.0
        %v800 = vmax.f32 %v794, 0.0
        %v801 = vsub.f32 %v779, 0.5
        %v802 = vsub.f32 %v784, 0.5
        %v803 = vsub.f32 %v789, 0.5
        %v804 = vsub.f32 %v794, 0.5
        %v805 = vmax.f32 %v801, 0.0
        %v806 = vmax.f32 %v802, 0.0
        %v807 = vmax.f32 %v803, 0.0
        %v808 = vmax.f32 %v804, 0.0
        %v809 = vmul.f32 %v797, %v797
        %v810 = vmul.f32 %v798, %v798
        %v811 = vmul.f32 %v799, %v799
        %v812 = vmul.f32 %v800, %v800
        %v813 = vmul.f32 %v805, %v805
        %v814 = vmul.f32 %v806, %v806
        %v815 = vmul.f32 %v807, %v807
        %v816 = vmul.f32 %v808, %v808
        %v817 = vsub.f32 %v809, %v813
        %v818 = vsub.f32 %v810, %v814
        %v819 = vsub.f32 %v811, %v815
        %v820 = vsub.f32 %v812, %v816
        %v821 = vadd.f32 %v817, %v667
        %v822 = vadd.f32 %v818, %v668
        %v823 = vadd.f32 %v819, %v669
        %v824 = vadd.f32 %v820, %v670
        %v825 = vld [vmem:[%s5] sm:$0xff]
        %v826 = vld [vmem:[%s5 + $0x8] sm:$0xff]
        %v827 = vld [vmem:[%s5 + $0x10] sm:$0xff]
        %v828 = vld [vmem:[%s5 + $0x18] sm:$0xff]
        %v829 = vld [vmem:[%s5 + $0x20] sm:$0xff]
        %v830 = vld [vmem:[%s5 + $0x28] sm:$0xff]
        %v831 = vld [vmem:[%s5 + $0x30] sm:$0xff]
        %v832 = vld [vmem:[%s5 + $0x38] sm:$0xff]
        %v833 = vld [vmem:[%s5 + $0x40] sm:$0xff]
        %v834 = vld [vmem:[%s6] sm:$0xff]
        %v835 = vld [vmem:[%s6 + $0x8] sm:$0xff]
        %v836 = vld [vmem:[%s6 + $0x10] sm:$0xff]
        %v837 = vld [vmem:[%s6 + $0x18] sm:$0xff]
        %v838 = vld [vmem:[%s6 + $0x20] sm:$0xff]
        %v839 = vld [vmem:[%s6 + $0x28] sm:$0xff]
        %v840 = vld [vmem:[%s6 + $0x30] sm:$0xff]
        %v841 = vld [vmem:[%s6 + $0x38] sm:$0xff]
        %v842 = vld [vmem:[%s6 + $0x40] sm:$0xff]
        %844 = vset.pattern.permute.xlu0 0
        %845 = vperm.xlu0 %844, %v834
        %v846 = vpop.permute.xlu0 %845
        %849 = vset.pattern.permute.xlu0 0
        %850 = vperm.xlu0 %849, %v835
        %v851 = vpop.permute.xlu0 %850
        %854 = vset.pattern.permute.xlu0 0
        %855 = vperm.xlu0 %854, %v836
        %v856 = vpop.permute.xlu0 %855
        %859 = vset.pattern.permute.xlu0 0
        %860 = vperm.xlu0 %859, %v837
        %v861 = vpop.permute.xlu0 %860
        %864 = vset.pattern.permute.xlu0 0
        %865 = vperm.xlu0 %864, %v838
        %v866 = vpop.permute.xlu0 %865
        %869 = vset.pattern.permute.xlu0 0
        %870 = vperm.xlu0 %869, %v839
        %v871 = vpop.permute.xlu0 %870
        %874 = vset.pattern.permute.xlu0 0
        %875 = vperm.xlu0 %874, %v840
        %v876 = vpop.permute.xlu0 %875
        %879 = vset.pattern.permute.xlu0 0
        %880 = vperm.xlu0 %879, %v841
        %v881 = vpop.permute.xlu0 %880
        %884 = vset.pattern.permute.xlu0 0
        %885 = vperm.xlu0 %884, %v842
        %v886 = vpop.permute.xlu0 %885
        %v889 = vsel %vm699, %v825, 0
        %v892 = vsel %vm699, %v826, 0
        %v895 = vsel %vm699, %v827, 0
        %v898 = vsel %vm699, %v828, 0
        %v901 = vsel %vm699, %v829, 0
        %v904 = vsel %vm699, %v830, 0
        %v907 = vsel %vm699, %v831, 0
        %v910 = vsel %vm699, %v832, 0
        %v913 = vsel %vm699, %v833, 0
        %915 = vmatprep.subr.mxu0 0.0
        %916 = vmatpush1.msra.mxu0 %v821
        %917 = vmatprep.subr.mxu0 0.0
        %918 = vmatpush1.msra.mxu0 %v822
        %919 = vmatprep.subr.mxu0 0.0
        %920 = vmatpush1.msra.mxu0 %v823
        %921 = vmatprep.subr.mxu0 0.0
        %922 = vmatpush1.msra.mxu0 %v824
        %923 = vmatprep.subr.mxu0 0.0
        %924 = vmatpush1.msra.mxu0 0.0
        %925 = vmatprep.subr.mxu0 0.0
        %926 = vmatpush1.msra.mxu0 0.0
        %927 = vmatprep.subr.mxu0 0.0
        %928 = vmatpush1.msra.mxu0 0.0
        %929 = vmatprep.subr.mxu0 0.0
        %930 = vmatpush1.msra.mxu0 0.0
        %931 = vmatprep.subr.mxu0 0.0
        %932 = vmatpush1.msra.mxu0 0.0
        %933 = vmatprep.subr.mxu0 0.0
        %934 = vmatpush1.msra.mxu0 0.0
        %935 = vmatprep.subr.mxu0 0.0
        %936 = vmatpush1.msra.mxu0 0.0
        %937 = vmatprep.subr.mxu0 0.0
        %938 = vmatpush1.msra.mxu0 0.0
        %939 = vmatprep.subr.mxu0 0.0
        %940 = vmatpush1.msra.mxu0 0.0
        %941 = vmatprep.subr.mxu0 0.0
        %942 = vmatpush1.msra.mxu0 0.0
        %943 = vmatprep.subr.mxu0 0.0
        %944 = vmatpush1.msra.mxu0 0.0
        %945 = vmatprep.subr.mxu0 0.0
        %946 = vmatpush1.msra.mxu0 0.0
        %947 = vmatprep.subr.mxu0 0.0
        %948 = vmatpush1.msra.mxu0 0.0
        %949 = vmatprep.subr.mxu0 0.0
        %950 = vmatpush1.msra.mxu0 0.0
        %951 = vmatprep.subr.mxu0 0.0
        %952 = vmatpush1.msra.mxu0 0.0
        %953 = vmatprep.subr.mxu0 0.0
        %954 = vmatpush1.msra.mxu0 0.0
        %955 = vmatprep.subr.mxu0 0.0
        %956 = vmatpush1.msra.mxu0 0.0
        %957 = vmatprep.subr.mxu0 0.0
        %958 = vmatpush1.msra.mxu0 0.0
        %959 = vmatprep.subr.mxu0 0.0
        %960 = vmatpush1.msra.mxu0 0.0
        %961 = vmatprep.subr.mxu0 0.0
        %962 = vmatpush1.msra.mxu0 0.0
        %963 = vmatprep.subr.mxu0 0.0
        %964 = vmatpush1.msra.mxu0 0.0
        %965 = vmatprep.subr.mxu0 0.0
        %966 = vmatpush1.msra.mxu0 0.0
        %967 = vmatprep.subr.mxu0 0.0
        %968 = vmatpush1.msra.mxu0 0.0
        %969 = vmatprep.subr.mxu0 0.0
        %970 = vmatpush1.msra.mxu0 0.0
        %971 = vmatprep.subr.mxu0 0.0
        %972 = vmatpush1.msra.mxu0 0.0
        %973 = vmatprep.subr.mxu0 0.0
        %974 = vmatpush1.msra.mxu0 0.0
        %975 = vmatprep.subr.mxu0 0.0
        %976 = vmatpush1.msra.mxu0 0.0
        %977 = vmatprep.subr.mxu0 0.0
        %978 = vmatpush1.msra.mxu0 0.0
        %979 = vmatprep.mubr.f32.mxu0 0.0
        %980 = vmatmul.mubr.f32.gmra.mrb[0].mxu0 %v889
        %v981 = vpop.f32.mrb[0].mxu0
        %v982 = vadd.f32 %v846, %v981
        %v983 = vpop.f32.mrb[0].mxu0
        %984 = vmatprep.mubr.f32.mxu0 0.0
        %985 = vmatmul.mubr.f32.gmra.mrb[0].mxu0 %v892
        %v986 = vpop.f32.mrb[0].mxu0
        %v987 = vadd.f32 %v851, %v986
        %v988 = vpop.f32.mrb[0].mxu0
        %989 = vmatprep.mubr.f32.mxu0 0.0
        %990 = vmatmul.mubr.f32.gmra.mrb[0].mxu0 %v895
        %v991 = vpop.f32.mrb[0].mxu0
        %v992 = vadd.f32 %v856, %v991
        %v993 = vpop.f32.mrb[0].mxu0
        %994 = vmatprep.mubr.f32.mxu0 0.0
        %995 = vmatmul.mubr.f32.gmra.mrb[0].mxu0 %v898
        %v996 = vpop.f32.mrb[0].mxu0
        %v997 = vadd.f32 %v861, %v996
        %v998 = vpop.f32.mrb[0].mxu0
        %999 = vmatprep.mubr.f32.mxu0 0.0
        %1000 = vmatmul.mubr.f32.gmra.mrb[0].mxu0 %v901
        %v1001 = vpop.f32.mrb[0].mxu0
        %v1002 = vadd.f32 %v866, %v1001
        %v1003 = vpop.f32.mrb[0].mxu0
        %1004 = vmatprep.mubr.f32.mxu0 0.0
        %1005 = vmatmul.mubr.f32.gmra.mrb[0].mxu0 %v904
        %v1006 = vpop.f32.mrb[0].mxu0
        %v1007 = vadd.f32 %v871, %v1006
        %v1008 = vpop.f32.mrb[0].mxu0
        %1009 = vmatprep.mubr.f32.mxu0 0.0
        %1010 = vmatmul.mubr.f32.gmra.mrb[0].mxu0 %v907
        %v1011 = vpop.f32.mrb[0].mxu0
        %v1012 = vadd.f32 %v876, %v1011
        %v1013 = vpop.f32.mrb[0].mxu0
        %1014 = vmatprep.mubr.f32.mxu0 0.0
        %1015 = vmatmul.mubr.f32.gmra.mrb[0].mxu0 %v910
        %v1016 = vpop.f32.mrb[0].mxu0
        %v1017 = vadd.f32 %v881, %v1016
        %v1018 = vpop.f32.mrb[0].mxu0
        %1019 = vmatprep.mubr.f32.mxu0 0.0
        %1020 = vmatmul.mubr.f32.gmra.mrb[0].mxu0 %v913
        %v1021 = vpop.f32.mrb[0].mxu0
        %v1022 = vadd.f32 %v886, %v1021
        %v1023 = vpop.f32.mrb[0].mxu0
        %1024 = vdwg.mxu0
        %v1025 = vadd.f32 %v982, %v639
        %v1026 = vmul.f32 %v1025, 2.0
        %v1027 = vld [vmem:[%s7] sm:$0xff]
        %v1028 = vld [vmem:[%s7 + $0x8] sm:$0xff]
        %v1029 = vld [vmem:[%s7 + $0x10] sm:$0xff]
        %v1030 = vld [vmem:[%s7 + $0x18] sm:$0xff]
        %v1031 = vld [vmem:[%s7 + $0x20] sm:$0xff]
        %v1033 = vsel %vm533, %v1027, 0
        %v1036 = vsel %vm533, %v1028, 0
        %v1039 = vsel %vm533, %v1029, 0
        %v1042 = vsel %vm533, %v1030, 0
        %v1045 = vsel %vm533, %v1031, 0
        %1047 = vmatprep.subr.mxu0 0.0
        %1048 = vmatpush1.msra.mxu0 %v1026
        %1049 = vmatprep.subr.mxu0 0.0
        %1050 = vmatpush1.msra.mxu0 0.0
        %1051 = vmatprep.subr.mxu0 0.0
        %1052 = vmatpush1.msra.mxu0 0.0
        %1053 = vmatprep.subr.mxu0 0.0
        %1054 = vmatpush1.msra.mxu0 0.0
        %1055 = vmatprep.subr.mxu0 0.0
        %1056 = vmatpush1.msra.mxu0 0.0
        %1057 = vmatprep.subr.mxu0 0.0
        %1058 = vmatpush1.msra.mxu0 0.0
        %1059 = vmatprep.subr.mxu0 0.0
        %1060 = vmatpush1.msra.mxu0 0.0
        %1061 = vmatprep.subr.mxu0 0.0
        %1062 = vmatpush1.msra.mxu0 0.0
        %1063 = vmatprep.subr.mxu0 0.0
        %1064 = vmatpush1.msra.mxu0 0.0
        %1065 = vmatprep.subr.mxu0 0.0
        %1066 = vmatpush1.msra.mxu0 0.0
        %1067 = vmatprep.subr.mxu0 0.0
        %1068 = vmatpush1.msra.mxu0 0.0
        %1069 = vmatprep.subr.mxu0 0.0
        %1070 = vmatpush1.msra.mxu0 0.0
        %1071 = vmatprep.subr.mxu0 0.0
        %1072 = vmatpush1.msra.mxu0 0.0
        %1073 = vmatprep.subr.mxu0 0.0
        %1074 = vmatpush1.msra.mxu0 0.0
        %1075 = vmatprep.subr.mxu0 0.0
        %1076 = vmatpush1.msra.mxu0 0.0
        %1077 = vmatprep.subr.mxu0 0.0
        %1078 = vmatpush1.msra.mxu0 0.0
        %1079 = vmatprep.subr.mxu0 0.0
        %1080 = vmatpush1.msra.mxu0 0.0
        %1081 = vmatprep.subr.mxu0 0.0
        %1082 = vmatpush1.msra.mxu0 0.0
        %1083 = vmatprep.subr.mxu0 0.0
        %1084 = vmatpush1.msra.mxu0 0.0
        %1085 = vmatprep.subr.mxu0 0.0
        %1086 = vmatpush1.msra.mxu0 0.0
        %1087 = vmatprep.subr.mxu0 0.0
        %1088 = vmatpush1.msra.mxu0 0.0
        %1089 = vmatprep.subr.mxu0 0.0
        %1090 = vmatpush1.msra.mxu0 0.0
        %1091 = vmatprep.subr.mxu0 0.0
        %1092 = vmatpush1.msra.mxu0 0.0
        %1093 = vmatprep.subr.mxu0 0.0
        %1094 = vmatpush1.msra.mxu0 0.0
        %1095 = vmatprep.subr.mxu0 0.0
        %1096 = vmatpush1.msra.mxu0 0.0
        %1097 = vmatprep.subr.mxu0 0.0
        %1098 = vmatpush1.msra.mxu0 0.0
        %1099 = vmatprep.subr.mxu0 0.0
        %1100 = vmatpush1.msra.mxu0 0.0
        %1101 = vmatprep.subr.mxu0 0.0
        %1102 = vmatpush1.msra.mxu0 0.0
        %1103 = vmatprep.subr.mxu0 0.0
        %1104 = vmatpush1.msra.mxu0 0.0
        %1105 = vmatprep.subr.mxu0 0.0
        %1106 = vmatpush1.msra.mxu0 0.0
        %1107 = vmatprep.subr.mxu0 0.0
        %1108 = vmatpush1.msra.mxu0 0.0
        %1109 = vmatprep.subr.mxu0 0.0
        %1110 = vmatpush1.msra.mxu0 0.0
        %1111 = vmatprep.mubr.f32.mxu0 0.0
        %1112 = vmatmul.mubr.f32.gmra.mrb[0].mxu0 %v1033
        %v1113 = vpop.f32.mrb[0].mxu0
        %v1114 = vadd.f32 0.0, %v1113
        %v1115 = vpop.f32.mrb[0].mxu0
        %1116 = vmatprep.mubr.f32.mxu0 0.0
        %1117 = vmatmul.mubr.f32.gmra.mrb[0].mxu0 %v1036
        %v1118 = vpop.f32.mrb[0].mxu0
        %v1119 = vadd.f32 0.0, %v1118
        %v1120 = vpop.f32.mrb[0].mxu0
        %1121 = vmatprep.mubr.f32.mxu0 0.0
        %1122 = vmatmul.mubr.f32.gmra.mrb[0].mxu0 %v1039
        %v1123 = vpop.f32.mrb[0].mxu0
        %v1124 = vadd.f32 0.0, %v1123
        %v1125 = vpop.f32.mrb[0].mxu0
        %1126 = vmatprep.mubr.f32.mxu0 0.0
        %1127 = vmatmul.mubr.f32.gmra.mrb[0].mxu0 %v1042
        %v1128 = vpop.f32.mrb[0].mxu0
        %v1129 = vadd.f32 0.0, %v1128
        %v1130 = vpop.f32.mrb[0].mxu0
        %1131 = vmatprep.mubr.f32.mxu0 0.0
        %1132 = vmatmul.mubr.f32.gmra.mrb[0].mxu0 %v1045
        %v1133 = vpop.f32.mrb[0].mxu0
        %v1134 = vadd.f32 0.0, %v1133
        %v1135 = vpop.f32.mrb[0].mxu0
        %1136 = vdwg.mxu0
        %v1137 = vmul.f32 %v797, 2.0
        %v1138 = vmul.f32 %v798, 2.0
        %v1139 = vmul.f32 %v799, 2.0
        %v1140 = vmul.f32 %v800, 2.0
        %v1141 = vmul.f32 %v805, 2.0
        %v1142 = vmul.f32 %v806, 2.0
        %v1143 = vmul.f32 %v807, 2.0
        %v1144 = vmul.f32 %v808, 2.0
        %v1145 = vsub.f32 %v1137, %v1141
        %v1146 = vsub.f32 %v1138, %v1142
        %v1147 = vsub.f32 %v1139, %v1143
        %v1148 = vsub.f32 %v1140, %v1144
        %v1149 = vmul.f32 %v1114, %v1145
        %v1150 = vmul.f32 %v1119, %v1146
        %v1151 = vmul.f32 %v1124, %v1147
        %v1152 = vmul.f32 %v1129, %v1148
        %v1153 = vld [vmem:[%s8] sm:$0xff]
        %v1154 = vld [vmem:[%s8 + $0x8] sm:$0xff]
        %v1155 = vld [vmem:[%s8 + $0x10] sm:$0xff]
        %v1156 = vld [vmem:[%s8 + $0x18] sm:$0xff]
        %v1158 = vsel %vm699, %v1153, 0
        %v1161 = vsel %vm699, %v1154, 0
        %v1164 = vsel %vm699, %v1155, 0
        %v1167 = vsel %vm699, %v1156, 0
        %1169 = vmatprep.subr.mxu0 0.0
        %1170 = vmatpush1.msra.mxu0 %v1149
        %1171 = vmatprep.subr.mxu0 0.0
        %1172 = vmatpush1.msra.mxu0 %v1150
        %1173 = vmatprep.subr.mxu0 0.0
        %1174 = vmatpush1.msra.mxu0 %v1151
        %1175 = vmatprep.subr.mxu0 0.0
        %1176 = vmatpush1.msra.mxu0 %v1152
        %1177 = vmatprep.subr.mxu0 0.0
        %1178 = vmatpush1.msra.mxu0 0.0
        %1179 = vmatprep.subr.mxu0 0.0
        %1180 = vmatpush1.msra.mxu0 0.0
        %1181 = vmatprep.subr.mxu0 0.0
        %1182 = vmatpush1.msra.mxu0 0.0
        %1183 = vmatprep.subr.mxu0 0.0
        %1184 = vmatpush1.msra.mxu0 0.0
        %1185 = vmatprep.subr.mxu0 0.0
        %1186 = vmatpush1.msra.mxu0 0.0
        %1187 = vmatprep.subr.mxu0 0.0
        %1188 = vmatpush1.msra.mxu0 0.0
        %1189 = vmatprep.subr.mxu0 0.0
        %1190 = vmatpush1.msra.mxu0 0.0
        %1191 = vmatprep.subr.mxu0 0.0
        %1192 = vmatpush1.msra.mxu0 0.0
        %1193 = vmatprep.subr.mxu0 0.0
        %1194 = vmatpush1.msra.mxu0 0.0
        %1195 = vmatprep.subr.mxu0 0.0
        %1196 = vmatpush1.msra.mxu0 0.0
        %1197 = vmatprep.subr.mxu0 0.0
        %1198 = vmatpush1.msra.mxu0 0.0
        %1199 = vmatprep.subr.mxu0 0.0
        %1200 = vmatpush1.msra.mxu0 0.0
        %1201 = vmatprep.subr.mxu0 0.0
        %1202 = vmatpush1.msra.mxu0 0.0
        %1203 = vmatprep.subr.mxu0 0.0
        %1204 = vmatpush1.msra.mxu0 0.0
        %1205 = vmatprep.subr.mxu0 0.0
        %1206 = vmatpush1.msra.mxu0 0.0
        %1207 = vmatprep.subr.mxu0 0.0
        %1208 = vmatpush1.msra.mxu0 0.0
        %1209 = vmatprep.subr.mxu0 0.0
        %1210 = vmatpush1.msra.mxu0 0.0
        %1211 = vmatprep.subr.mxu0 0.0
        %1212 = vmatpush1.msra.mxu0 0.0
        %1213 = vmatprep.subr.mxu0 0.0
        %1214 = vmatpush1.msra.mxu0 0.0
        %1215 = vmatprep.subr.mxu0 0.0
        %1216 = vmatpush1.msra.mxu0 0.0
        %1217 = vmatprep.subr.mxu0 0.0
        %1218 = vmatpush1.msra.mxu0 0.0
        %1219 = vmatprep.subr.mxu0 0.0
        %1220 = vmatpush1.msra.mxu0 0.0
        %1221 = vmatprep.subr.mxu0 0.0
        %1222 = vmatpush1.msra.mxu0 0.0
        %1223 = vmatprep.subr.mxu0 0.0
        %1224 = vmatpush1.msra.mxu0 0.0
        %1225 = vmatprep.subr.mxu0 0.0
        %1226 = vmatpush1.msra.mxu0 0.0
        %1227 = vmatprep.subr.mxu0 0.0
        %1228 = vmatpush1.msra.mxu0 0.0
        %1229 = vmatprep.subr.mxu0 0.0
        %1230 = vmatpush1.msra.mxu0 0.0
        %1231 = vmatprep.subr.mxu0 0.0
        %1232 = vmatpush1.msra.mxu0 0.0
        %1233 = vmatprep.mubr.f32.mxu0 0.0
        %1234 = vmatmul.mubr.f32.gmra.mrb[0].mxu0 %v1158
        %v1235 = vpop.f32.mrb[0].mxu0
        %v1236 = vadd.f32 %v1114, %v1235
        %v1237 = vpop.f32.mrb[0].mxu0
        %1238 = vmatprep.mubr.f32.mxu0 0.0
        %1239 = vmatmul.mubr.f32.gmra.mrb[0].mxu0 %v1161
        %v1240 = vpop.f32.mrb[0].mxu0
        %v1241 = vadd.f32 %v1119, %v1240
        %v1242 = vpop.f32.mrb[0].mxu0
        %1243 = vmatprep.mubr.f32.mxu0 0.0
        %1244 = vmatmul.mubr.f32.gmra.mrb[0].mxu0 %v1164
        %v1245 = vpop.f32.mrb[0].mxu0
        %v1246 = vadd.f32 %v1124, %v1245
        %v1247 = vpop.f32.mrb[0].mxu0
        %1248 = vmatprep.mubr.f32.mxu0 0.0
        %1249 = vmatmul.mubr.f32.gmra.mrb[0].mxu0 %v1167
        %v1250 = vpop.f32.mrb[0].mxu0
        %v1251 = vadd.f32 %v1129, %v1250
        %v1252 = vpop.f32.mrb[0].mxu0
        %1253 = vdwg.mxu0
        %v1254 = vmul.f32 %v647, 2.0
        %v1255 = vmul.f32 %v648, 2.0
        %v1256 = vmul.f32 %v649, 2.0
        %v1257 = vmul.f32 %v650, 2.0
        %v1258 = vmul.f32 %v655, 2.0
        %v1259 = vmul.f32 %v656, 2.0
        %v1260 = vmul.f32 %v657, 2.0
        %v1261 = vmul.f32 %v658, 2.0
        %v1262 = vsub.f32 %v1254, %v1258
        %v1263 = vsub.f32 %v1255, %v1259
        %v1264 = vsub.f32 %v1256, %v1260
        %v1265 = vsub.f32 %v1257, %v1261
        %v1266 = vmul.f32 %v1236, %v1262
        %v1267 = vmul.f32 %v1241, %v1263
        %v1268 = vmul.f32 %v1246, %v1264
        %v1269 = vmul.f32 %v1251, %v1265
        %v1270 = vld [vmem:[%s9] sm:$0xff]
        %v1272 = vsel %vm699, %v1270, 0
        %1274 = vmatprep.subr.mxu0 0.0
        %1275 = vmatpush1.msra.mxu0 %v1266
        %1276 = vmatprep.subr.mxu0 0.0
        %1277 = vmatpush1.msra.mxu0 %v1267
        %1278 = vmatprep.subr.mxu0 0.0
        %1279 = vmatpush1.msra.mxu0 %v1268
        %1280 = vmatprep.subr.mxu0 0.0
        %1281 = vmatpush1.msra.mxu0 %v1269
        %1282 = vmatprep.subr.mxu0 0.0
        %1283 = vmatpush1.msra.mxu0 0.0
        %1284 = vmatprep.subr.mxu0 0.0
        %1285 = vmatpush1.msra.mxu0 0.0
        %1286 = vmatprep.subr.mxu0 0.0
        %1287 = vmatpush1.msra.mxu0 0.0
        %1288 = vmatprep.subr.mxu0 0.0
        %1289 = vmatpush1.msra.mxu0 0.0
        %1290 = vmatprep.subr.mxu0 0.0
        %1291 = vmatpush1.msra.mxu0 0.0
        %1292 = vmatprep.subr.mxu0 0.0
        %1293 = vmatpush1.msra.mxu0 0.0
        %1294 = vmatprep.subr.mxu0 0.0
        %1295 = vmatpush1.msra.mxu0 0.0
        %1296 = vmatprep.subr.mxu0 0.0
        %1297 = vmatpush1.msra.mxu0 0.0
        %1298 = vmatprep.subr.mxu0 0.0
        %1299 = vmatpush1.msra.mxu0 0.0
        %1300 = vmatprep.subr.mxu0 0.0
        %1301 = vmatpush1.msra.mxu0 0.0
        %1302 = vmatprep.subr.mxu0 0.0
        %1303 = vmatpush1.msra.mxu0 0.0
        %1304 = vmatprep.subr.mxu0 0.0
        %1305 = vmatpush1.msra.mxu0 0.0
        %1306 = vmatprep.subr.mxu0 0.0
        %1307 = vmatpush1.msra.mxu0 0.0
        %1308 = vmatprep.subr.mxu0 0.0
        %1309 = vmatpush1.msra.mxu0 0.0
        %1310 = vmatprep.subr.mxu0 0.0
        %1311 = vmatpush1.msra.mxu0 0.0
        %1312 = vmatprep.subr.mxu0 0.0
        %1313 = vmatpush1.msra.mxu0 0.0
        %1314 = vmatprep.subr.mxu0 0.0
        %1315 = vmatpush1.msra.mxu0 0.0
        %1316 = vmatprep.subr.mxu0 0.0
        %1317 = vmatpush1.msra.mxu0 0.0
        %1318 = vmatprep.subr.mxu0 0.0
        %1319 = vmatpush1.msra.mxu0 0.0
        %1320 = vmatprep.subr.mxu0 0.0
        %1321 = vmatpush1.msra.mxu0 0.0
        %1322 = vmatprep.subr.mxu0 0.0
        %1323 = vmatpush1.msra.mxu0 0.0
        %1324 = vmatprep.subr.mxu0 0.0
        %1325 = vmatpush1.msra.mxu0 0.0
        %1326 = vmatprep.subr.mxu0 0.0
        %1327 = vmatpush1.msra.mxu0 0.0
        %1328 = vmatprep.subr.mxu0 0.0
        %1329 = vmatpush1.msra.mxu0 0.0
        %1330 = vmatprep.subr.mxu0 0.0
        %1331 = vmatpush1.msra.mxu0 0.0
        %1332 = vmatprep.subr.mxu0 0.0
        %1333 = vmatpush1.msra.mxu0 0.0
        %1334 = vmatprep.subr.mxu0 0.0
        %1335 = vmatpush1.msra.mxu0 0.0
        %1336 = vmatprep.subr.mxu0 0.0
        %1337 = vmatpush1.msra.mxu0 0.0
        %1338 = vmatprep.mubr.f32.mxu0 0.0
        %1339 = vmatmul.mubr.f32.gmra.mrb[0].mxu0 %v1272
        %v1340 = vpop.f32.mrb[0].mxu0
        %v1341 = vadd.f32 %v1134, %v1340
        %v1342 = vpop.f32.mrb[0].mxu0
        %1343 = vdwg.mxu0
        %v1344 = vmul.f32 %v490, 0.2
        %v1345 = vadd.f32 %v1341, %v1344
        %v1346 = vsub.f32 0.0, %v1345
        %v1347 = vld [vmem:[%s10] sm:$0xff]
        %v1348 = vld [vmem:[%s10 + $0x8] sm:$0xff]
        %v1349 = vld [vmem:[%s10 + $0x10] sm:$0xff]
        %v1350 = vld [vmem:[%s10 + $0x18] sm:$0xff]
        %v1351 = vld [vmem:[%s10 + $0x20] sm:$0xff]
        %v1352 = vld [vmem:[%s10 + $0x28] sm:$0xff]
        %v1353 = vld [vmem:[%s10 + $0x30] sm:$0xff]
        %v1354 = vld [vmem:[%s10 + $0x38] sm:$0xff]
        %v1355 = vld [vmem:[%s10 + $0x40] sm:$0xff]
        %v1356 = vld [vmem:[%s10 + $0x48] sm:$0xff]
        %v1357 = vld [vmem:[%s10 + $0x50] sm:$0xff]
        %v1358 = vld [vmem:[%s10 + $0x58] sm:$0xff]
        %v1359 = vld [vmem:[%s10 + $0x60] sm:$0xff]
        %v1360 = vld [vmem:[%s10 + $0x68] sm:$0xff]
        %v1361 = vld [vmem:[%s10 + $0x70] sm:$0xff]
        %v1362 = vld [vmem:[%s10 + $0x78] sm:$0xff]
        %v1364 = vsel %vm533, %v1347, 0
        %v1367 = vsel %vm533, %v1348, 0
        %v1370 = vsel %vm533, %v1349, 0
        %v1373 = vsel %vm533, %v1350, 0
        %v1376 = vsel %vm533, %v1351, 0
        %v1379 = vsel %vm533, %v1352, 0
        %v1382 = vsel %vm533, %v1353, 0
        %v1385 = vsel %vm533, %v1354, 0
        %v1388 = vsel %vm533, %v1355, 0
        %v1391 = vsel %vm533, %v1356, 0
        %v1394 = vsel %vm533, %v1357, 0
        %v1397 = vsel %vm533, %v1358, 0
        %v1400 = vsel %vm533, %v1359, 0
        %v1403 = vsel %vm533, %v1360, 0
        %v1406 = vsel %vm533, %v1361, 0
        %v1409 = vsel %vm533, %v1362, 0
        %1411 = vmatprep.subr.mxu0 0.0
        %1412 = vmatpush1.msra.mxu0 %v1346
        %1413 = vmatprep.subr.mxu0 0.0
        %1414 = vmatpush1.msra.mxu0 0.0
        %1415 = vmatprep.subr.mxu0 0.0
        %1416 = vmatpush1.msra.mxu0 0.0
        %1417 = vmatprep.subr.mxu0 0.0
        %1418 = vmatpush1.msra.mxu0 0.0
        %1419 = vmatprep.subr.mxu0 0.0
        %1420 = vmatpush1.msra.mxu0 0.0
        %1421 = vmatprep.subr.mxu0 0.0
        %1422 = vmatpush1.msra.mxu0 0.0
        %1423 = vmatprep.subr.mxu0 0.0
        %1424 = vmatpush1.msra.mxu0 0.0
        %1425 = vmatprep.subr.mxu0 0.0
        %1426 = vmatpush1.msra.mxu0 0.0
        %1427 = vmatprep.subr.mxu0 0.0
        %1428 = vmatpush1.msra.mxu0 0.0
        %1429 = vmatprep.subr.mxu0 0.0
        %1430 = vmatpush1.msra.mxu0 0.0
        %1431 = vmatprep.subr.mxu0 0.0
        %1432 = vmatpush1.msra.mxu0 0.0
        %1433 = vmatprep.subr.mxu0 0.0
        %1434 = vmatpush1.msra.mxu0 0.0
        %1435 = vmatprep.subr.mxu0 0.0
        %1436 = vmatpush1.msra.mxu0 0.0
        %1437 = vmatprep.subr.mxu0 0.0
        %1438 = vmatpush1.msra.mxu0 0.0
        %1439 = vmatprep.subr.mxu0 0.0
        %1440 = vmatpush1.msra.mxu0 0.0
        %1441 = vmatprep.subr.mxu0 0.0
        %1442 = vmatpush1.msra.mxu0 0.0
        %1443 = vmatprep.subr.mxu0 0.0
        %1444 = vmatpush1.msra.mxu0 0.0
        %1445 = vmatprep.subr.mxu0 0.0
        %1446 = vmatpush1.msra.mxu0 0.0
        %1447 = vmatprep.subr.mxu0 0.0
        %1448 = vmatpush1.msra.mxu0 0.0
        %1449 = vmatprep.subr.mxu0 0.0
        %1450 = vmatpush1.msra.mxu0 0.0
        %1451 = vmatprep.subr.mxu0 0.0
        %1452 = vmatpush1.msra.mxu0 0.0
        %1453 = vmatprep.subr.mxu0 0.0
        %1454 = vmatpush1.msra.mxu0 0.0
        %1455 = vmatprep.subr.mxu0 0.0
        %1456 = vmatpush1.msra.mxu0 0.0
        %1457 = vmatprep.subr.mxu0 0.0
        %1458 = vmatpush1.msra.mxu0 0.0
        %1459 = vmatprep.subr.mxu0 0.0
        %1460 = vmatpush1.msra.mxu0 0.0
        %1461 = vmatprep.subr.mxu0 0.0
        %1462 = vmatpush1.msra.mxu0 0.0
        %1463 = vmatprep.subr.mxu0 0.0
        %1464 = vmatpush1.msra.mxu0 0.0
        %1465 = vmatprep.subr.mxu0 0.0
        %1466 = vmatpush1.msra.mxu0 0.0
        %1467 = vmatprep.subr.mxu0 0.0
        %1468 = vmatpush1.msra.mxu0 0.0
        %1469 = vmatprep.subr.mxu0 0.0
        %1470 = vmatpush1.msra.mxu0 0.0
        %1471 = vmatprep.subr.mxu0 0.0
        %1472 = vmatpush1.msra.mxu0 0.0
        %1473 = vmatprep.subr.mxu0 0.0
        %1474 = vmatpush1.msra.mxu0 0.0
        %1475 = vmatprep.mubr.f32.mxu0 0.0
        %1476 = vmatmul.mubr.f32.gmra.mrb[0].mxu0 %v1364
        %v1477 = vpop.f32.mrb[0].mxu0
        %v1478 = vadd.f32 0.0, %v1477
        %v1479 = vpop.f32.mrb[0].mxu0
        %1480 = vmatprep.mubr.f32.mxu0 0.0
        %1481 = vmatmul.mubr.f32.gmra.mrb[0].mxu0 %v1367
        %v1482 = vpop.f32.mrb[0].mxu0
        %v1483 = vadd.f32 0.0, %v1482
        %v1484 = vpop.f32.mrb[0].mxu0
        %1485 = vmatprep.mubr.f32.mxu0 0.0
        %1486 = vmatmul.mubr.f32.gmra.mrb[0].mxu0 %v1370
        %v1487 = vpop.f32.mrb[0].mxu0
        %v1488 = vadd.f32 0.0, %v1487
        %v1489 = vpop.f32.mrb[0].mxu0
        %1490 = vmatprep.mubr.f32.mxu0 0.0
        %1491 = vmatmul.mubr.f32.gmra.mrb[0].mxu0 %v1373
        %v1492 = vpop.f32.mrb[0].mxu0
        %v1493 = vadd.f32 0.0, %v1492
        %v1494 = vpop.f32.mrb[0].mxu0
        %1495 = vmatprep.mubr.f32.mxu0 0.0
        %1496 = vmatmul.mubr.f32.gmra.mrb[0].mxu0 %v1376
        %v1497 = vpop.f32.mrb[0].mxu0
        %v1498 = vadd.f32 0.0, %v1497
        %v1499 = vpop.f32.mrb[0].mxu0
        %1500 = vmatprep.mubr.f32.mxu0 0.0
        %1501 = vmatmul.mubr.f32.gmra.mrb[0].mxu0 %v1379
        %v1502 = vpop.f32.mrb[0].mxu0
        %v1503 = vadd.f32 0.0, %v1502
        %v1504 = vpop.f32.mrb[0].mxu0
        %1505 = vmatprep.mubr.f32.mxu0 0.0
        %1506 = vmatmul.mubr.f32.gmra.mrb[0].mxu0 %v1382
        %v1507 = vpop.f32.mrb[0].mxu0
        %v1508 = vadd.f32 0.0, %v1507
        %v1509 = vpop.f32.mrb[0].mxu0
        %1510 = vmatprep.mubr.f32.mxu0 0.0
        %1511 = vmatmul.mubr.f32.gmra.mrb[0].mxu0 %v1385
        %v1512 = vpop.f32.mrb[0].mxu0
        %v1513 = vadd.f32 0.0, %v1512
        %v1514 = vpop.f32.mrb[0].mxu0
        %1515 = vmatprep.mubr.f32.mxu0 0.0
        %1516 = vmatmul.mubr.f32.gmra.mrb[0].mxu0 %v1388
        %v1517 = vpop.f32.mrb[0].mxu0
        %v1518 = vadd.f32 0.0, %v1517
        %v1519 = vpop.f32.mrb[0].mxu0
        %1520 = vmatprep.mubr.f32.mxu0 0.0
        %1521 = vmatmul.mubr.f32.gmra.mrb[0].mxu0 %v1391
        %v1522 = vpop.f32.mrb[0].mxu0
        %v1523 = vadd.f32 0.0, %v1522
        %v1524 = vpop.f32.mrb[0].mxu0
        %1525 = vmatprep.mubr.f32.mxu0 0.0
        %1526 = vmatmul.mubr.f32.gmra.mrb[0].mxu0 %v1394
        %v1527 = vpop.f32.mrb[0].mxu0
        %v1528 = vadd.f32 0.0, %v1527
        %v1529 = vpop.f32.mrb[0].mxu0
        %1530 = vmatprep.mubr.f32.mxu0 0.0
        %1531 = vmatmul.mubr.f32.gmra.mrb[0].mxu0 %v1397
        %v1532 = vpop.f32.mrb[0].mxu0
        %v1533 = vadd.f32 0.0, %v1532
        %v1534 = vpop.f32.mrb[0].mxu0
        %1535 = vmatprep.mubr.f32.mxu0 0.0
        %1536 = vmatmul.mubr.f32.gmra.mrb[0].mxu0 %v1400
        %v1537 = vpop.f32.mrb[0].mxu0
        %v1538 = vadd.f32 0.0, %v1537
        %v1539 = vpop.f32.mrb[0].mxu0
        %1540 = vmatprep.mubr.f32.mxu0 0.0
        %1541 = vmatmul.mubr.f32.gmra.mrb[0].mxu0 %v1403
        %v1542 = vpop.f32.mrb[0].mxu0
        %v1543 = vadd.f32 0.0, %v1542
        %v1544 = vpop.f32.mrb[0].mxu0
        %1545 = vmatprep.mubr.f32.mxu0 0.0
        %1546 = vmatmul.mubr.f32.gmra.mrb[0].mxu0 %v1406
        %v1547 = vpop.f32.mrb[0].mxu0
        %v1548 = vadd.f32 0.0, %v1547
        %v1549 = vpop.f32.mrb[0].mxu0
        %1550 = vmatprep.mubr.f32.mxu0 0.0
        %1551 = vmatmul.mubr.f32.gmra.mrb[0].mxu0 %v1409
        %v1552 = vpop.f32.mrb[0].mxu0
        %v1553 = vadd.f32 0.0, %v1552
        %v1554 = vpop.f32.mrb[0].mxu0
        %1555 = vdwg.mxu0
        %v1556 = vmul.f32 %v987, %v1478
        %v1557 = vmul.f32 %v992, %v1483
        %v1558 = vmul.f32 %v997, %v1488
        %v1559 = vmul.f32 %v1002, %v1493
        %v1560 = vmul.f32 %v1007, %v1498
        %v1561 = vmul.f32 %v1012, %v1503
        %v1562 = vmul.f32 %v1017, %v1508
        %v1563 = vmul.f32 %v1022, %v1513
        %v1564 = vld [vmem:[%s11] sm:$0xff]
        %v1565 = vld [vmem:[%s11 + $0x8] sm:$0xff]
        %vm1566 = vcmask 523264
        %v1568 = vsel %vm1566, %v1564, 0
        %v1571 = vsel %vm1566, %v1565, 0
        %1573 = vmatprep.subr.mxu0 0.0
        %1574 = vmatpush1.msra.mxu0 %v1556
        %1575 = vmatprep.subr.mxu0 0.0
        %1576 = vmatpush1.msra.mxu0 %v1557
        %1577 = vmatprep.subr.mxu0 0.0
        %1578 = vmatpush1.msra.mxu0 %v1558
        %1579 = vmatprep.subr.mxu0 0.0
        %1580 = vmatpush1.msra.mxu0 %v1559
        %1581 = vmatprep.subr.mxu0 0.0
        %1582 = vmatpush1.msra.mxu0 %v1560
        %1583 = vmatprep.subr.mxu0 0.0
        %1584 = vmatpush1.msra.mxu0 %v1561
        %1585 = vmatprep.subr.mxu0 0.0
        %1586 = vmatpush1.msra.mxu0 %v1562
        %1587 = vmatprep.subr.mxu0 0.0
        %1588 = vmatpush1.msra.mxu0 %v1563
        %1589 = vmatprep.subr.mxu0 0.0
        %1590 = vmatpush1.msra.mxu0 0.0
        %1591 = vmatprep.subr.mxu0 0.0
        %1592 = vmatpush1.msra.mxu0 0.0
        %1593 = vmatprep.subr.mxu0 0.0
        %1594 = vmatpush1.msra.mxu0 0.0
        %1595 = vmatprep.subr.mxu0 0.0
        %1596 = vmatpush1.msra.mxu0 0.0
        %1597 = vmatprep.subr.mxu0 0.0
        %1598 = vmatpush1.msra.mxu0 0.0
        %1599 = vmatprep.subr.mxu0 0.0
        %1600 = vmatpush1.msra.mxu0 0.0
        %1601 = vmatprep.subr.mxu0 0.0
        %1602 = vmatpush1.msra.mxu0 0.0
        %1603 = vmatprep.subr.mxu0 0.0
        %1604 = vmatpush1.msra.mxu0 0.0
        %1605 = vmatprep.subr.mxu0 0.0
        %1606 = vmatpush1.msra.mxu0 0.0
        %1607 = vmatprep.subr.mxu0 0.0
        %1608 = vmatpush1.msra.mxu0 0.0
        %1609 = vmatprep.subr.mxu0 0.0
        %1610 = vmatpush1.msra.mxu0 0.0
        %1611 = vmatprep.subr.mxu0 0.0
        %1612 = vmatpush1.msra.mxu0 0.0
        %1613 = vmatprep.subr.mxu0 0.0
        %1614 = vmatpush1.msra.mxu0 0.0
        %1615 = vmatprep.subr.mxu0 0.0
        %1616 = vmatpush1.msra.mxu0 0.0
        %1617 = vmatprep.subr.mxu0 0.0
        %1618 = vmatpush1.msra.mxu0 0.0
        %1619 = vmatprep.subr.mxu0 0.0
        %1620 = vmatpush1.msra.mxu0 0.0
        %1621 = vmatprep.subr.mxu0 0.0
        %1622 = vmatpush1.msra.mxu0 0.0
        %1623 = vmatprep.subr.mxu0 0.0
        %1624 = vmatpush1.msra.mxu0 0.0
        %1625 = vmatprep.subr.mxu0 0.0
        %1626 = vmatpush1.msra.mxu0 0.0
        %1627 = vmatprep.subr.mxu0 0.0
        %1628 = vmatpush1.msra.mxu0 0.0
        %1629 = vmatprep.subr.mxu0 0.0
        %1630 = vmatpush1.msra.mxu0 0.0
        %1631 = vmatprep.subr.mxu0 0.0
        %1632 = vmatpush1.msra.mxu0 0.0
        %1633 = vmatprep.subr.mxu0 0.0
        %1634 = vmatpush1.msra.mxu0 0.0
        %1635 = vmatprep.subr.mxu0 0.0
        %1636 = vmatpush1.msra.mxu0 0.0
        %1637 = vmatprep.mubr.f32.mxu0 0.0
        %1638 = vmatmul.mubr.f32.gmra.mrb[0].mxu0 %v1568
        %v1639 = vpop.f32.mrb[0].mxu0
        %v1640 = vadd.f32 0.0, %v1639
        %v1641 = vpop.f32.mrb[0].mxu0
        %1642 = vmatprep.mubr.f32.mxu0 0.0
        %1643 = vmatmul.mubr.f32.gmra.mrb[0].mxu0 %v1571
        %v1644 = vpop.f32.mrb[0].mxu0
        %v1645 = vadd.f32 0.0, %v1644
        %v1646 = vpop.f32.mrb[0].mxu0
        %1647 = vdwg.mxu0
        %v1648 = vld [vmem:[%s12] sm:$0xff]
        %v1649 = vld [vmem:[%s12 + $0x8] sm:$0xff]
        %v1650 = vld [vmem:[%s12 + $0x10] sm:$0xff]
        %v1651 = vld [vmem:[%s12 + $0x18] sm:$0xff]
        %v1652 = vld [vmem:[%s12 + $0x20] sm:$0xff]
        %v1653 = vld [vmem:[%s12 + $0x28] sm:$0xff]
        %v1654 = vld [vmem:[%s12 + $0x30] sm:$0xff]
        %v1655 = vld [vmem:[%s12 + $0x38] sm:$0xff]
        %v1657 = vsel %vm533, %v1648, 0
        %v1660 = vsel %vm533, %v1649, 0
        %v1663 = vsel %vm533, %v1650, 0
        %v1666 = vsel %vm533, %v1651, 0
        %v1669 = vsel %vm533, %v1652, 0
        %v1672 = vsel %vm533, %v1653, 0
        %v1675 = vsel %vm533, %v1654, 0
        %v1678 = vsel %vm533, %v1655, 0
        %1680 = vmatprep.subr.mxu0 0.0
        %1681 = vmatpush1.msra.mxu0 %v1640
        %1682 = vmatprep.subr.mxu0 0.0
        %1683 = vmatpush1.msra.mxu0 0.0
        %1684 = vmatprep.subr.mxu0 0.0
        %1685 = vmatpush1.msra.mxu0 0.0
        %1686 = vmatprep.subr.mxu0 0.0
        %1687 = vmatpush1.msra.mxu0 0.0
        %1688 = vmatprep.subr.mxu0 0.0
        %1689 = vmatpush1.msra.mxu0 0.0
        %1690 = vmatprep.subr.mxu0 0.0
        %1691 = vmatpush1.msra.mxu0 0.0
        %1692 = vmatprep.subr.mxu0 0.0
        %1693 = vmatpush1.msra.mxu0 0.0
        %1694 = vmatprep.subr.mxu0 0.0
        %1695 = vmatpush1.msra.mxu0 0.0
        %1696 = vmatprep.subr.mxu0 0.0
        %1697 = vmatpush1.msra.mxu0 0.0
        %1698 = vmatprep.subr.mxu0 0.0
        %1699 = vmatpush1.msra.mxu0 0.0
        %1700 = vmatprep.subr.mxu0 0.0
        %1701 = vmatpush1.msra.mxu0 0.0
        %1702 = vmatprep.subr.mxu0 0.0
        %1703 = vmatpush1.msra.mxu0 0.0
        %1704 = vmatprep.subr.mxu0 0.0
        %1705 = vmatpush1.msra.mxu0 0.0
        %1706 = vmatprep.subr.mxu0 0.0
        %1707 = vmatpush1.msra.mxu0 0.0
        %1708 = vmatprep.subr.mxu0 0.0
        %1709 = vmatpush1.msra.mxu0 0.0
        %1710 = vmatprep.subr.mxu0 0.0
        %1711 = vmatpush1.msra.mxu0 0.0
        %1712 = vmatprep.subr.mxu0 0.0
        %1713 = vmatpush1.msra.mxu0 0.0
        %1714 = vmatprep.subr.mxu0 0.0
        %1715 = vmatpush1.msra.mxu0 0.0
        %1716 = vmatprep.subr.mxu0 0.0
        %1717 = vmatpush1.msra.mxu0 0.0
        %1718 = vmatprep.subr.mxu0 0.0
        %1719 = vmatpush1.msra.mxu0 0.0
        %1720 = vmatprep.subr.mxu0 0.0
        %1721 = vmatpush1.msra.mxu0 0.0
        %1722 = vmatprep.subr.mxu0 0.0
        %1723 = vmatpush1.msra.mxu0 0.0
        %1724 = vmatprep.subr.mxu0 0.0
        %1725 = vmatpush1.msra.mxu0 0.0
        %1726 = vmatprep.subr.mxu0 0.0
        %1727 = vmatpush1.msra.mxu0 0.0
        %1728 = vmatprep.subr.mxu0 0.0
        %1729 = vmatpush1.msra.mxu0 0.0
        %1730 = vmatprep.subr.mxu0 0.0
        %1731 = vmatpush1.msra.mxu0 0.0
        %1732 = vmatprep.subr.mxu0 0.0
        %1733 = vmatpush1.msra.mxu0 0.0
        %1734 = vmatprep.subr.mxu0 0.0
        %1735 = vmatpush1.msra.mxu0 0.0
        %1736 = vmatprep.subr.mxu0 0.0
        %1737 = vmatpush1.msra.mxu0 0.0
        %1738 = vmatprep.subr.mxu0 0.0
        %1739 = vmatpush1.msra.mxu0 0.0
        %1740 = vmatprep.subr.mxu0 0.0
        %1741 = vmatpush1.msra.mxu0 0.0
        %1742 = vmatprep.subr.mxu0 0.0
        %1743 = vmatpush1.msra.mxu0 0.0
        %1744 = vmatprep.mubr.f32.mxu0 0.0
        %1745 = vmatmul.mubr.f32.gmra.mrb[0].mxu0 %v1657
        %v1746 = vpop.f32.mrb[0].mxu0
        %v1747 = vadd.f32 0.0, %v1746
        %v1748 = vpop.f32.mrb[0].mxu0
        %1749 = vmatprep.mubr.f32.mxu0 0.0
        %1750 = vmatmul.mubr.f32.gmra.mrb[0].mxu0 %v1660
        %v1751 = vpop.f32.mrb[0].mxu0
        %v1752 = vadd.f32 0.0, %v1751
        %v1753 = vpop.f32.mrb[0].mxu0
        %1754 = vmatprep.mubr.f32.mxu0 0.0
        %1755 = vmatmul.mubr.f32.gmra.mrb[0].mxu0 %v1663
        %v1756 = vpop.f32.mrb[0].mxu0
        %v1757 = vadd.f32 0.0, %v1756
        %v1758 = vpop.f32.mrb[0].mxu0
        %1759 = vmatprep.mubr.f32.mxu0 0.0
        %1760 = vmatmul.mubr.f32.gmra.mrb[0].mxu0 %v1666
        %v1761 = vpop.f32.mrb[0].mxu0
        %v1762 = vadd.f32 0.0, %v1761
        %v1763 = vpop.f32.mrb[0].mxu0
        %1764 = vmatprep.mubr.f32.mxu0 0.0
        %1765 = vmatmul.mubr.f32.gmra.mrb[0].mxu0 %v1669
        %v1766 = vpop.f32.mrb[0].mxu0
        %v1767 = vadd.f32 0.0, %v1766
        %v1768 = vpop.f32.mrb[0].mxu0
        %1769 = vmatprep.mubr.f32.mxu0 0.0
        %1770 = vmatmul.mubr.f32.gmra.mrb[0].mxu0 %v1672
        %v1771 = vpop.f32.mrb[0].mxu0
        %v1772 = vadd.f32 0.0, %v1771
        %v1773 = vpop.f32.mrb[0].mxu0
        %1774 = vmatprep.mubr.f32.mxu0 0.0
        %1775 = vmatmul.mubr.f32.gmra.mrb[0].mxu0 %v1675
        %v1776 = vpop.f32.mrb[0].mxu0
        %v1777 = vadd.f32 0.0, %v1776
        %v1778 = vpop.f32.mrb[0].mxu0
        %1779 = vmatprep.mubr.f32.mxu0 0.0
        %1780 = vmatmul.mubr.f32.gmra.mrb[0].mxu0 %v1678
        %v1781 = vpop.f32.mrb[0].mxu0
        %v1782 = vadd.f32 0.0, %v1781
        %v1783 = vpop.f32.mrb[0].mxu0
        %1784 = vdwg.mxu0
        %v1785 = vld [vmem:[%s13] sm:$0xff]
        %v1786 = vmul.f32 %v987, %v1747
        %v1787 = vmul.f32 %v992, %v1752
        %v1788 = vmul.f32 %v997, %v1757
        %v1789 = vmul.f32 %v1002, %v1762
        %v1790 = vmul.f32 %v1007, %v1767
        %v1791 = vmul.f32 %v1012, %v1772
        %v1792 = vmul.f32 %v1017, %v1777
        %v1793 = vmul.f32 %v1022, %v1782
        %v1794 = vld [vmem:[%s14] sm:$0xff]
        %v1795 = vmul.f32 %v987, %v1518
        %v1796 = vmul.f32 %v992, %v1523
        %v1797 = vmul.f32 %v997, %v1528
        %v1798 = vmul.f32 %v1002, %v1533
        %v1799 = vmul.f32 %v1007, %v1538
        %v1800 = vmul.f32 %v1012, %v1543
        %v1801 = vmul.f32 %v1017, %v1548
        %v1802 = vmul.f32 %v1022, %v1553
        %v1804 = vsel %vm1566, %v1794, 0
        %1806 = vmatprep.subr.mxu0 0.0
        %1807 = vmatpush1.msra.mxu0 %v1795
        %1808 = vmatprep.subr.mxu0 0.0
        %1809 = vmatpush1.msra.mxu0 %v1796
        %1810 = vmatprep.subr.mxu0 0.0
        %1811 = vmatpush1.msra.mxu0 %v1797
        %1812 = vmatprep.subr.mxu0 0.0
        %1813 = vmatpush1.msra.mxu0 %v1798
        %1814 = vmatprep.subr.mxu0 0.0
        %1815 = vmatpush1.msra.mxu0 %v1799
        %1816 = vmatprep.subr.mxu0 0.0
        %1817 = vmatpush1.msra.mxu0 %v1800
        %1818 = vmatprep.subr.mxu0 0.0
        %1819 = vmatpush1.msra.mxu0 %v1801
        %1820 = vmatprep.subr.mxu0 0.0
        %1821 = vmatpush1.msra.mxu0 %v1802
        %1822 = vmatprep.subr.mxu0 0.0
        %1823 = vmatpush1.msra.mxu0 0.0
        %1824 = vmatprep.subr.mxu0 0.0
        %1825 = vmatpush1.msra.mxu0 0.0
        %1826 = vmatprep.subr.mxu0 0.0
        %1827 = vmatpush1.msra.mxu0 0.0
        %1828 = vmatprep.subr.mxu0 0.0
        %1829 = vmatpush1.msra.mxu0 0.0
        %1830 = vmatprep.subr.mxu0 0.0
        %1831 = vmatpush1.msra.mxu0 0.0
        %1832 = vmatprep.subr.mxu0 0.0
        %1833 = vmatpush1.msra.mxu0 0.0
        %1834 = vmatprep.subr.mxu0 0.0
        %1835 = vmatpush1.msra.mxu0 0.0
        %1836 = vmatprep.subr.mxu0 0.0
        %1837 = vmatpush1.msra.mxu0 0.0
        %1838 = vmatprep.subr.mxu0 0.0
        %1839 = vmatpush1.msra.mxu0 0.0
        %1840 = vmatprep.subr.mxu0 0.0
        %1841 = vmatpush1.msra.mxu0 0.0
        %1842 = vmatprep.subr.mxu0 0.0
        %1843 = vmatpush1.msra.mxu0 0.0
        %1844 = vmatprep.subr.mxu0 0.0
        %1845 = vmatpush1.msra.mxu0 0.0
        %1846 = vmatprep.subr.mxu0 0.0
        %1847 = vmatpush1.msra.mxu0 0.0
        %1848 = vmatprep.subr.mxu0 0.0
        %1849 = vmatpush1.msra.mxu0 0.0
        %1850 = vmatprep.subr.mxu0 0.0
        %1851 = vmatpush1.msra.mxu0 0.0
        %1852 = vmatprep.subr.mxu0 0.0
        %1853 = vmatpush1.msra.mxu0 0.0
        %1854 = vmatprep.subr.mxu0 0.0
        %1855 = vmatpush1.msra.mxu0 0.0
        %1856 = vmatprep.subr.mxu0 0.0
        %1857 = vmatpush1.msra.mxu0 0.0
        %1858 = vmatprep.subr.mxu0 0.0
        %1859 = vmatpush1.msra.mxu0 0.0
        %1860 = vmatprep.subr.mxu0 0.0
        %1861 = vmatpush1.msra.mxu0 0.0
        %1862 = vmatprep.subr.mxu0 0.0
        %1863 = vmatpush1.msra.mxu0 0.0
        %1864 = vmatprep.subr.mxu0 0.0
        %1865 = vmatpush1.msra.mxu0 0.0
        %1866 = vmatprep.subr.mxu0 0.0
        %1867 = vmatpush1.msra.mxu0 0.0
        %1868 = vmatprep.subr.mxu0 0.0
        %1869 = vmatpush1.msra.mxu0 0.0
        %1870 = vmatprep.mubr.f32.mxu0 0.0
        %1871 = vmatmul.mubr.f32.gmra.mrb[0].mxu0 %v1804
        %v1872 = vpop.f32.mrb[0].mxu0
        %v1873 = vadd.f32 0.0, %v1872
        %v1874 = vpop.f32.mrb[0].mxu0
        %1875 = vdwg.mxu0
        %v1877 = vsel %vm1566, %v1785, 0
        %1879 = vmatprep.subr.mxu0 0.0
        %1880 = vmatpush1.msra.mxu0 %v1786
        %1881 = vmatprep.subr.mxu0 0.0
        %1882 = vmatpush1.msra.mxu0 %v1787
        %1883 = vmatprep.subr.mxu0 0.0
        %1884 = vmatpush1.msra.mxu0 %v1788
        %1885 = vmatprep.subr.mxu0 0.0
        %1886 = vmatpush1.msra.mxu0 %v1789
        %1887 = vmatprep.subr.mxu0 0.0
        %1888 = vmatpush1.msra.mxu0 %v1790
        %1889 = vmatprep.subr.mxu0 0.0
        %1890 = vmatpush1.msra.mxu0 %v1791
        %1891 = vmatprep.subr.mxu0 0.0
        %1892 = vmatpush1.msra.mxu0 %v1792
        %1893 = vmatprep.subr.mxu0 0.0
        %1894 = vmatpush1.msra.mxu0 %v1793
        %1895 = vmatprep.subr.mxu0 0.0
        %1896 = vmatpush1.msra.mxu0 0.0
        %1897 = vmatprep.subr.mxu0 0.0
        %1898 = vmatpush1.msra.mxu0 0.0
        %1899 = vmatprep.subr.mxu0 0.0
        %1900 = vmatpush1.msra.mxu0 0.0
        %1901 = vmatprep.subr.mxu0 0.0
        %1902 = vmatpush1.msra.mxu0 0.0
        %1903 = vmatprep.subr.mxu0 0.0
        %1904 = vmatpush1.msra.mxu0 0.0
        %1905 = vmatprep.subr.mxu0 0.0
        %1906 = vmatpush1.msra.mxu0 0.0
        %1907 = vmatprep.subr.mxu0 0.0
        %1908 = vmatpush1.msra.mxu0 0.0
        %1909 = vmatprep.subr.mxu0 0.0
        %1910 = vmatpush1.msra.mxu0 0.0
        %1911 = vmatprep.subr.mxu0 0.0
        %1912 = vmatpush1.msra.mxu0 0.0
        %1913 = vmatprep.subr.mxu0 0.0
        %1914 = vmatpush1.msra.mxu0 0.0
        %1915 = vmatprep.subr.mxu0 0.0
        %1916 = vmatpush1.msra.mxu0 0.0
        %1917 = vmatprep.subr.mxu0 0.0
        %1918 = vmatpush1.msra.mxu0 0.0
        %1919 = vmatprep.subr.mxu0 0.0
        %1920 = vmatpush1.msra.mxu0 0.0
        %1921 = vmatprep.subr.mxu0 0.0
        %1922 = vmatpush1.msra.mxu0 0.0
        %1923 = vmatprep.subr.mxu0 0.0
        %1924 = vmatpush1.msra.mxu0 0.0
        %1925 = vmatprep.subr.mxu0 0.0
        %1926 = vmatpush1.msra.mxu0 0.0
        %1927 = vmatprep.subr.mxu0 0.0
        %1928 = vmatpush1.msra.mxu0 0.0
        %1929 = vmatprep.subr.mxu0 0.0
        %1930 = vmatpush1.msra.mxu0 0.0
        %1931 = vmatprep.subr.mxu0 0.0
        %1932 = vmatpush1.msra.mxu0 0.0
        %1933 = vmatprep.subr.mxu0 0.0
        %1934 = vmatpush1.msra.mxu0 0.0
        %1935 = vmatprep.subr.mxu0 0.0
        %1936 = vmatpush1.msra.mxu0 0.0
        %1937 = vmatprep.subr.mxu0 0.0
        %1938 = vmatpush1.msra.mxu0 0.0
        %1939 = vmatprep.subr.mxu0 0.0
        %1940 = vmatpush1.msra.mxu0 0.0
        %1941 = vmatprep.subr.mxu0 0.0
        %1942 = vmatpush1.msra.mxu0 0.0
        %1943 = vmatprep.mubr.f32.mxu0 0.0
        %1944 = vmatmul.mubr.f32.gmra.mrb[0].mxu0 %v1877
        %v1945 = vpop.f32.mrb[0].mxu0
        %v1946 = vadd.f32 %v1873, %v1945
        %v1947 = vpop.f32.mrb[0].mxu0
        %1948 = vdwg.mxu0
        %v1949 = vsub.f32 %v1946, %v1645
        %v1950 = vmul.f32 %v1346, 0.1
        %v1951 = vadd.f32 %v1949, %v1950
        %v1952 = vadd.f32 %v1951, %v644
        %1953 = vst [vmem:[%s485] sm:$0xff] %v1952
        %s1954 = sand.u32 %s357, 1
        %s1955 = scalar_lea.sflag [#allocation3], %s1954
        %s1956 = sand.u32 %s357, 1
        %s1957 = smul.addr %s1956, 8
        %s1958 = scalar_lea.vmem [#allocation2], %s1957
        // Predicated region
        $region81: #{onsager_forward.1} parent=79 // pred_check
          %p1959 = pneg %p367
        $region82: #{onsager_forward.1} parent=79 // pred_check_branch
          %1961 = sbr.rel (%p1959) target = $region84
        $region83: #{onsager_forward.1} parent=79 // pred_region
          %s1963 = ssub.s32 128, 128
          %1964 = vsyncadd %s1955, %s1963
          %s1965 = smul.addr %s29, 128
          %s1966 = scalar_lea.hbm %s15, %s1965
          %s1968 = sshll.u32 %s1958, 4
          %s1969 = int_to_ptr.vmem [resolvable:$true] %s1968
          %1971 = dma.vmem_to_hbm [thread:$0]  %s1969, 128, %s1966, %s1955
        $region84: #{onsager_forward.1} parent=79 // pred_fallthru
          _
      $region80: #{onsager_forward.1} parent=5 // pred_fallthru
        _
      %p1972 = scmp.le.s32.totalorder 2, %s24
      // Predicated region
      $region85: #{onsager_forward.1} parent=5 // pred_check
        %p1973 = pneg %p1972
      $region86: #{onsager_forward.1} parent=5 // pred_check_branch
        %1975 = sbr.rel (%p1973) target = $region88
      $region87: #{onsager_forward.1} parent=5 // pred_region
        %s1976 = ssub.s32 %s24, 2
        // Predicated region
        $region89: #{onsager_forward.1} parent=87 // pred_check
          %p1977 = pneg %p373
        $region90: #{onsager_forward.1} parent=87 // pred_check_branch
          %1979 = sbr.rel (%p1977) target = $region92
        $region91: #{onsager_forward.1} parent=87 // pred_region
          %s1980 = sand.u32 %s358, 1
          %s1981 = scalar_lea.sflag [#allocation3], %s1980
          %s1982 = sand.u32 %s358, 1
          %s1983 = smul.addr %s1982, 8
          %s1984 = scalar_lea.vmem [#allocation2], %s1983
          %1985 = dma.done %s1981, 128
        $region92: #{onsager_forward.1} parent=87 // pred_fallthru
          _
      $region88: #{onsager_forward.1} parent=5 // pred_fallthru
        _
    $region6: #{onsager_forward.1} parent=1 // loop_footer
      %s28 = sadd.s32 1, %s24
    $region7: #{onsager_forward.1} parent=1 // loop_footer_branch
      %23 = sbr.rel target = $region3
    $region8: #{onsager_forward.1} parent=1 // loop_exit
      _
    %1986 = vsyncpa [#allocation3], 1
    %s1987 = scalar_lea.sflag [#allocation3], 1
    %1988 = vsyncpa %s1987, 1

</llo_original>
